<compile_context>
chip_gen: v6e
topology: v6e:2x2x1
jax: 0.10.0
libtpu: 0.0.40
codegen_flags: <defaults>
</compile_context>

<pallas_src>
import numpy as np
import jax
import jax.numpy as jnp
from jax.experimental import pallas as pl
from jax.experimental.pallas import tpu as pltpu

_LANE = 128


def _ceil_to(v, m):
    return ((v + m - 1) // m) * m


# ----------------------------- Pallas kernels ------------------------------

def _make_conv3x3_kernel(stride, Hout, Wout, relu, mode):
    """3x3 conv (input already spatially padded, channels lane-padded) done as
    a single im2col matmul on the MXU, + bias (BN scale pre-folded into the
    weights), + fused shortcut (identity add or 1x1 projection), + ReLU.
    One batch element per grid step."""

    def conv_accum(xp, w_ref):
        Cin = xp.shape[-1]
        cols = []
        for kh in range(3):
            for kw in range(3):
                if stride == 1:
                    patch = xp[kh:kh + Hout, kw:kw + Wout, :]
                else:
                    patch = jax.lax.slice(
                        xp,
                        (kh, kw, 0),
                        (kh + (Hout - 1) * stride + 1,
                         kw + (Wout - 1) * stride + 1,
                         Cin),
                        (stride, stride, 1))
                cols.append(patch.reshape(Hout * Wout, Cin))
        xcol = jnp.concatenate(cols, axis=-1)          # [HW, 9*Cin] bf16
        # Single MXU matmul, K = 9*Cin_pad, f32 accumulation.
        return jnp.dot(xcol, w_ref[...], preferred_element_type=jnp.float32)

    if mode == "proj":
        def kernel(xp_ref, w_ref, b_ref, rx_ref, wsc_ref, bsc_ref, o_ref):
            out = conv_accum(xp_ref[0], w_ref) + b_ref[...]
            rx = rx_ref[0].reshape(Hout * Wout, rx_ref.shape[-1])
            proj = jnp.dot(rx, wsc_ref[...],
                           preferred_element_type=jnp.float32) + bsc_ref[...]
            out = out + proj
            if relu:
                out = jnp.maximum(out, 0.0)
            o_ref[0] = out.reshape(Hout, Wout, -1).astype(o_ref.dtype)
    elif mode == "add":
        def kernel(xp_ref, w_ref, b_ref, res_ref, o_ref):
            out = conv_accum(xp_ref[0], w_ref) + b_ref[...]
            out = out + res_ref[0].reshape(Hout * Wout, -1).astype(jnp.float32)
            if relu:
                out = jnp.maximum(out, 0.0)
            o_ref[0] = out.reshape(Hout, Wout, -1).astype(o_ref.dtype)
    else:
        def kernel(xp_ref, w_ref, b_ref, o_ref):
            out = conv_accum(xp_ref[0], w_ref) + b_ref[...]
            if relu:
                out = jnp.maximum(out, 0.0)
            o_ref[0] = out.reshape(Hout, Wout, -1).astype(o_ref.dtype)
    return kernel


# ------------------------------ wrappers ------------------------------------

def conv3x3_bn_fused(xp, w, b, *, stride, Hout, Wout, relu, out_dtype,
                     residual=None, proj=None):
    """xp: [N, H+2, W+2, Cin_pad] bf16 (spatially padded, lane-padded)
       w : [9*Cin_pad, Cout_pad] bf16 (BN scale folded in)
       b : [1, Cout_pad] f32
       residual: [N, Hout, Wout, Cout_pad] f32 (identity shortcut), or
       proj: (x_strided [N,Hout,Wout,Cin0_pad] bf16, w_sc [Cin0_pad,Cout_pad]
              bf16, b_sc [1,Cout_pad] f32) fused 1x1-conv shortcut."""
    N, Hp, Wp, Cin = xp.shape
    K, Cout = w.shape

    in_specs = [
        pl.BlockSpec((1, Hp, Wp, Cin), lambda n: (n, 0, 0, 0)),
        pl.BlockSpec((K, Cout), lambda n: (0, 0)),
        pl.BlockSpec((1, Cout), lambda n: (0, 0)),
    ]
    args = [xp, w, b]
    flops = 2 * N * Hout * Wout * K * Cout
    mode = "none"

    if proj is not None:
        rx, wsc, bsc = proj
        Cin_sc = rx.shape[-1]
        in_specs += [
            pl.BlockSpec((1, Hout, Wout, Cin_sc), lambda n: (n, 0, 0, 0)),
            pl.BlockSpec((Cin_sc, Cout), lambda n: (0, 0)),
            pl.BlockSpec((1, Cout), lambda n: (0, 0)),
        ]
        args += [rx, wsc, bsc]
        flops += 2 * N * Hout * Wout * Cin_sc * Cout
        mode = "proj"
    elif residual is not None:
        in_specs.append(pl.BlockSpec((1, Hout, Wout, Cout),
                                     lambda n: (n, 0, 0, 0)))
        args.append(residual)
        mode = "add"

    bytes_accessed = (sum(int(a.size) * a.dtype.itemsize for a in args)
                      + N * Hout * Wout * Cout * jnp.dtype(out_dtype).itemsize)

    kernel = _make_conv3x3_kernel(stride, Hout, Wout, relu, mode)
    return pl.pallas_call(
        kernel,
        out_shape=jax.ShapeDtypeStruct((N, Hout, Wout, Cout), out_dtype),
        grid=(N,),
        in_specs=in_specs,
        out_specs=pl.BlockSpec((1, Hout, Wout, Cout), lambda n: (n, 0, 0, 0)),
        compiler_params=pltpu.CompilerParams(
            dimension_semantics=("parallel",)),
        cost_estimate=pl.CostEstimate(flops=flops, transcendentals=0,
                                      bytes_accessed=bytes_accessed),
    )(*args)


# --------------------------- param preparation (glue) ------------------------

def _fold_bn(gamma, beta, mean, var, eps=1e-5):
    scale = gamma / jnp.sqrt(var + eps)
    bias = beta - mean * scale
    return scale, bias                                  # 1-D (C,)


def _prep_w3x3(w_oihw, scale, cin_p, cout_p):
    """OIHW -> (fold BN scale) -> pad channels -> [9*Cin_pad, Cout_pad] bf16."""
    w = jnp.transpose(w_oihw, (2, 3, 1, 0)).astype(jnp.float32)   # HWIO
    w = w * scale.reshape(1, 1, 1, -1)
    w = jnp.pad(w, ((0, 0), (0, 0),
                    (0, cin_p - w.shape[2]), (0, cout_p - w.shape[3])))
    return w.reshape(9 * cin_p, cout_p).astype(jnp.bfloat16)


def _prep_w1x1(w_oihw, scale, cin_p, cout_p):
    w = jnp.transpose(w_oihw[:, :, 0, 0], (1, 0)).astype(jnp.float32)  # [Cin,Cout]
    w = w * scale.reshape(1, -1)
    w = jnp.pad(w, ((0, cin_p - w.shape[0]), (0, cout_p - w.shape[1])))
    return w.astype(jnp.bfloat16)


def _pad_bias(b, cout_p):
    return jnp.pad(b, (0, cout_p - b.shape[0])).reshape(1, cout_p).astype(jnp.float32)


# ------------------------------ module --------------------------------------

class BasicBlockPallas:
    expansion = 1

    def __init__(self, in_planes, planes, stride=1, key=None):
        key = jax.random.PRNGKey(0) if key is None else key
        ks = jax.random.split(key, 6)
        self.in_planes = in_planes
        self.planes = planes
        self.stride = stride

        def conv_w(k, cout, cin, kh, kw):
            fan_in = cin * kh * kw
            bound = 1.0 / float(np.sqrt(fan_in))
            return jax.random.uniform(k, (cout, cin, kh, kw), jnp.float32,
                                      -bound, bound)          # OIHW

        def bn_params(k, c):
            k1, k2, k3, k4 = jax.random.split(k, 4)
            gamma = 1.0 + 0.1 * jax.random.normal(k1, (c,), jnp.float32)
            beta = 0.1 * jax.random.normal(k2, (c,), jnp.float32)
            mean = 0.1 * jax.random.normal(k3, (c,), jnp.float32)
            var = jnp.abs(1.0 + 0.1 * jax.random.normal(k4, (c,), jnp.float32))
            return gamma, beta, mean, var

        self.w1 = conv_w(ks[0], planes, in_planes, 3, 3)
        self.w2 = conv_w(ks[1], planes, planes, 3, 3)
        self.bn1 = bn_params(ks[2], planes)
        self.bn2 = bn_params(ks[3], planes)
        self.has_shortcut = (stride != 1) or (in_planes != self.expansion * planes)
        if self.has_shortcut:
            self.w_sc = conv_w(ks[4], self.expansion * planes, in_planes, 1, 1)
            self.bn_sc = bn_params(ks[5], self.expansion * planes)

    def __call__(self, x_nchw):
        f32, bf16 = jnp.float32, jnp.bfloat16
        x = jnp.transpose(x_nchw, (0, 2, 3, 1)).astype(f32)        # NHWC (glue)
        N, H, W, Cin = x.shape
        planes, stride = self.planes, self.stride
        Cinp = _ceil_to(Cin, _LANE)
        Cp = _ceil_to(planes, _LANE)
        Hout = (H - 1) // stride + 1
        Wout = (W - 1) // stride + 1

        s1, b1 = _fold_bn(*self.bn1)
        s2, b2 = _fold_bn(*self.bn2)
        w1 = _prep_w3x3(self.w1, s1, Cinp, Cp)
        w2 = _prep_w3x3(self.w2, s2, Cp, Cp)
        b1p = _pad_bias(b1, Cp)
        b2p = _pad_bias(b2, Cp)

        # conv1 + BN1 + ReLU  (single boundary pad: spatial halo + lane pad)
        xp1 = jnp.pad(x, ((0, 0), (1, 1), (1, 1), (0, Cinp - Cin))).astype(bf16)
        out1 = conv3x3_bn_fused(xp1, w1, b1p, stride=stride,
                                Hout=Hout, Wout=Wout, relu=True,
                                out_dtype=bf16)          # [N,Hout,Wout,Cp] bf16

        # conv2 + BN2 + shortcut + ReLU, fused in one kernel.
        xp2 = jnp.pad(out1, ((0, 0), (1, 1), (1, 1), (0, 0)))
        if self.has_shortcut:
            ssc, bsc = _fold_bn(*self.bn_sc)
            wsc = _prep_w1x1(self.w_sc, ssc, Cinp, Cp)
            bscp = _pad_bias(bsc, Cp)
            xs = x[:, ::stride, ::stride, :]                       # glue: 1x1 stride
            xs = jnp.pad(xs, ((0, 0), (0, 0), (0, 0),
                              (0, Cinp - Cin))).astype(bf16)
            out = conv3x3_bn_fused(xp2, w2, b2p, stride=1,
                                   Hout=Hout, Wout=Wout, relu=True,
                                   out_dtype=f32, proj=(xs, wsc, bscp))
        else:
            res = jnp.pad(x, ((0, 0), (0, 0), (0, 0), (0, Cp - Cin)))  # f32 identity
            out = conv3x3_bn_fused(xp2, w2, b2p, stride=1,
                                   Hout=Hout, Wout=Wout, relu=True,
                                   out_dtype=f32, residual=res)

        return jnp.transpose(out[..., :planes], (0, 3, 1, 2))      # NCHW (glue)


# --------------------------- reference (sanity) ------------------------------

def _ref_forward(block, x_nchw):
    """Faithful BasicBlock forward (inference-mode BN), mirroring the kernel's
    precision policy: BN scale folded into the conv weights, conv operands
    rounded to bf16, f32 accumulation, element-wise math in f32. Remaining
    differences vs. the Pallas path are summation-order only."""
    f32, bf16 = jnp.float32, jnp.bfloat16
    x = jnp.transpose(x_nchw, (0, 2, 3, 1)).astype(f32)

    def conv(inp, w_oihw, scale, stride, pad):
        w = jnp.transpose(w_oihw, (2, 3, 1, 0)).astype(f32) * scale.reshape(1, 1, 1, -1)
        return jax.lax.conv_general_dilated(
            inp.astype(bf16), w.astype(bf16), (stride, stride),
            [(pad, pad), (pad, pad)],
            dimension_numbers=("NHWC", "HWIO", "NHWC"),
            preferred_element_type=f32)

    s1, b1 = _fold_bn(*block.bn1)
    s2, b2 = _fold_bn(*block.bn2)

    out1 = jax.nn.relu(conv(x, block.w1, s1, block.stride, 1) + b1)
    out1 = out1.astype(bf16).astype(f32)     # kernel stores conv1 output in bf16
    out = conv(out1, block.w2, s2, 1, 1) + b2
    if block.has_shortcut:
        ssc, bsc = _fold_bn(*block.bn_sc)
        sc = conv(x, block.w_sc, ssc, block.stride, 0) + bsc
    else:
        sc = x
    return jnp.transpose(jax.nn.relu(out + sc), (0, 3, 1, 2))


if __name__ == "__main__":
    key = jax.random.PRNGKey(0)
    kx, kp = jax.random.split(key)
    # PyTorch-style NCHW input: batch=2, in_planes=4, 16x16 spatial.
    x = jax.random.normal(kx, (2, 4, 16, 16), jnp.float32)

    block = BasicBlockPallas(in_planes=4, planes=8, stride=1, key=kp)
    y = jax.block_until_ready(block(x))
    assert y.shape == (2, 8, 16, 16)

    y_ref = jax.block_until_ready(_ref_forward(block, x))
    # bf16 MXU operands / f32 accumulation on both paths; tolerance covers
    # summation-order and one-ulp bf16 re-rounding differences only.
    np.testing.assert_allclose(np.asarray(y), np.asarray(y_ref),
                               rtol=5e-3, atol=5e-3)
    print("KERNEL_OK")
</pallas_src>

<mosaic_0001>
module attributes {stable_mosaic.version = 11 : i64} {
  func.func @kernel(%arg0: i32, %arg1: memref<1x18x18x128xbf16, #tpu.memory_space<vmem>>, %arg2: memref<1152x128xbf16, #tpu.memory_space<vmem>>, %arg3: memref<1x128xf32, #tpu.memory_space<vmem>>, %arg4: memref<1x16x16x128xbf16, #tpu.memory_space<vmem>>) attributes {dimension_semantics = [#tpu.dimension_semantics<parallel>], iteration_bounds = array<i64: 2>, scalar_prefetch = 0 : i64, scratch_operands = 0 : i64, tpu.core_type = #tpu.core_type<tc>, window_params = [{transform_indices = @transform_0, window_bounds = array<i64: 1, 18, 18, 128>}, {pipeline_mode = #tpu.pipeline_mode<synchronous>, transform_indices = @transform_1, window_bounds = array<i64: 1152, 128>}, {pipeline_mode = #tpu.pipeline_mode<synchronous>, transform_indices = @transform_2, window_bounds = array<i64: 1, 128>}, {transform_indices = @transform_3, window_bounds = array<i64: 1, 16, 16, 128>}]} {
    %c0 = arith.constant 0 : index
    %c0_0 = arith.constant 0 : index
    %c0_1 = arith.constant 0 : index
    %c0_2 = arith.constant 0 : index
    %0 = vector.load %arg1[%c0, %c0_0, %c0_1, %c0_2] : memref<1x18x18x128xbf16, #tpu.memory_space<vmem>>, vector<1x18x18x128xbf16>
    %1 = vector.shape_cast %0 : vector<1x18x18x128xbf16> to vector<18x18x128xbf16>
    %2 = vector.extract_strided_slice %1 {offsets = [0, 0, 0], sizes = [16, 16, 128], strides = [1, 1, 1]} : vector<18x18x128xbf16> to vector<16x16x128xbf16>
    %3 = vector.shape_cast %2 : vector<16x16x128xbf16> to vector<256x128xbf16>
    %4 = vector.extract_strided_slice %1 {offsets = [0, 1, 0], sizes = [16, 16, 128], strides = [1, 1, 1]} : vector<18x18x128xbf16> to vector<16x16x128xbf16>
    %5 = vector.shape_cast %4 : vector<16x16x128xbf16> to vector<256x128xbf16>
    %6 = vector.extract_strided_slice %1 {offsets = [0, 2, 0], sizes = [16, 16, 128], strides = [1, 1, 1]} : vector<18x18x128xbf16> to vector<16x16x128xbf16>
    %7 = vector.shape_cast %6 : vector<16x16x128xbf16> to vector<256x128xbf16>
    %8 = vector.extract_strided_slice %1 {offsets = [1, 0, 0], sizes = [16, 16, 128], strides = [1, 1, 1]} : vector<18x18x128xbf16> to vector<16x16x128xbf16>
    %9 = vector.shape_cast %8 : vector<16x16x128xbf16> to vector<256x128xbf16>
    %10 = vector.extract_strided_slice %1 {offsets = [1, 1, 0], sizes = [16, 16, 128], strides = [1, 1, 1]} : vector<18x18x128xbf16> to vector<16x16x128xbf16>
    %11 = vector.shape_cast %10 : vector<16x16x128xbf16> to vector<256x128xbf16>
    %12 = vector.extract_strided_slice %1 {offsets = [1, 2, 0], sizes = [16, 16, 128], strides = [1, 1, 1]} : vector<18x18x128xbf16> to vector<16x16x128xbf16>
    %13 = vector.shape_cast %12 : vector<16x16x128xbf16> to vector<256x128xbf16>
    %14 = vector.extract_strided_slice %1 {offsets = [2, 0, 0], sizes = [16, 16, 128], strides = [1, 1, 1]} : vector<18x18x128xbf16> to vector<16x16x128xbf16>
    %15 = vector.shape_cast %14 : vector<16x16x128xbf16> to vector<256x128xbf16>
    %16 = vector.extract_strided_slice %1 {offsets = [2, 1, 0], sizes = [16, 16, 128], strides = [1, 1, 1]} : vector<18x18x128xbf16> to vector<16x16x128xbf16>
    %17 = vector.shape_cast %16 : vector<16x16x128xbf16> to vector<256x128xbf16>
    %18 = vector.extract_strided_slice %1 {offsets = [2, 2, 0], sizes = [16, 16, 128], strides = [1, 1, 1]} : vector<18x18x128xbf16> to vector<16x16x128xbf16>
    %19 = vector.shape_cast %18 : vector<16x16x128xbf16> to vector<256x128xbf16>
    %20 = tpu.concatenate %3, %5, %7, %9, %11, %13, %15, %17, %19 in 1 : vector<256x128xbf16>, vector<256x128xbf16>, vector<256x128xbf16>, vector<256x128xbf16>, vector<256x128xbf16>, vector<256x128xbf16>, vector<256x128xbf16>, vector<256x128xbf16>, vector<256x128xbf16> -> vector<256x1152xbf16>
    %c0_3 = arith.constant 0 : index
    %c0_4 = arith.constant 0 : index
    %21 = vector.load %arg2[%c0_3, %c0_4] : memref<1152x128xbf16, #tpu.memory_space<vmem>>, vector<1152x128xbf16>
    %cst = arith.constant dense<0.000000e+00> : vector<256x128xf32>
    %22 = tpu.matmul %20, %21, %cst {dimension_numbers = #tpu.dot_dimension_numbers<[1], [0], [0], [1], [0, 0, 1, 1], [], []>} : vector<256x1152xbf16>, vector<1152x128xbf16>, vector<256x128xf32> -> vector<256x128xf32>
    %c0_5 = arith.constant 0 : index
    %c0_6 = arith.constant 0 : index
    %23 = vector.load %arg3[%c0_5, %c0_6] : memref<1x128xf32, #tpu.memory_space<vmem>>, vector<1x128xf32>
    %24 = vector.broadcast %23 : vector<1x128xf32> to vector<256x128xf32>
    %25 = arith.addf %22, %24 : vector<256x128xf32>
    %cst_7 = arith.constant 0.000000e+00 : f32
    %26 = vector.broadcast %cst_7 : f32 to vector<256x128xf32>
    %27 = arith.maximumf %25, %26 : vector<256x128xf32>
    %28 = vector.shape_cast %27 : vector<256x128xf32> to vector<16x16x128xf32>
    %29 = arith.truncf %28 : vector<16x16x128xf32> to vector<16x16x128xbf16>
    %c0_8 = arith.constant 0 : index
    %c0_9 = arith.constant 0 : index
    %c0_10 = arith.constant 0 : index
    %c0_11 = arith.constant 0 : index
    %30 = vector.load %arg4[%c0_8, %c0_9, %c0_10, %c0_11] : memref<1x16x16x128xbf16, #tpu.memory_space<vmem>>, vector<1x16x16x128xbf16>
    %31 = vector.shape_cast %30 : vector<1x16x16x128xbf16> to vector<16x16x128xbf16>
    %32 = vector.shape_cast %29 : vector<16x16x128xbf16> to vector<1x16x16x128xbf16>
    tpu.vector_store %arg4[%c0_8, %c0_9, %c0_10, %c0_11], %32 {strides = array<i32>} : memref<1x16x16x128xbf16, #tpu.memory_space<vmem>>, vector<1x16x16x128xbf16>,
    return
  }
  func.func @transform_0(%arg0: i32) -> (i32, i32, i32, i32) {
    %c0_i32 = arith.constant 0 : i32
    %c0_i32_0 = arith.constant 0 : i32
    %c0_i32_1 = arith.constant 0 : i32
    %c0_i32_2 = arith.constant 0 : i32
    return %arg0, %c0_i32, %c0_i32_0, %c0_i32_1 : i32, i32, i32, i32
  }
  func.func @transform_1(%arg0: i32) -> (i32, i32) {
    %c0_i32 = arith.constant 0 : i32
    %c0_i32_0 = arith.constant 0 : i32
    %c0_i32_1 = arith.constant 0 : i32
    return %c0_i32, %c0_i32_0 : i32, i32
  }
  func.func @transform_2(%arg0: i32) -> (i32, i32) {
    %c0_i32 = arith.constant 0 : i32
    %c0_i32_0 = arith.constant 0 : i32
    %c0_i32_1 = arith.constant 0 : i32
    return %c0_i32, %c0_i32_0 : i32, i32
  }
  func.func @transform_3(%arg0: i32) -> (i32, i32, i32, i32) {
    %c0_i32 = arith.constant 0 : i32
    %c0_i32_0 = arith.constant 0 : i32
    %c0_i32_1 = arith.constant 0 : i32
    %c0_i32_2 = arith.constant 0 : i32
    return %arg0, %c0_i32, %c0_i32_0, %c0_i32_1 : i32, i32, i32, i32
  }
}

</mosaic_0001>

<llo_original>
// kernel: tpu_custom_call.1
$region0: #{tpu_custom_call.1}
  #allocation0 [shape = 'u32[]', space=smem, size = 0x4, offset = 0x4, fixed_abs, tag = 'smem constant byte address 0x4 - core index']
  #allocation1 [shape = 'u32[144,128]{1,0:T(1,128)}', space=vmem, size = 0x12000, scoped, tag = 'internal scratch']
  %s0 = inlined_call_operand.vmem [shape: bf16[2,18,18,128], index: 0, kind: input, shape index: {}]
  %s1 = inlined_call_operand.vmem [shape: bf16[1152,128], index: 1, kind: input, shape index: {}]
  %s2 = inlined_call_operand.vmem [shape: f32[1,128], index: 2, kind: input, shape index: {}]
  %s3 = inlined_call_operand.hbm [shape: bf16[2,16,16,128], index: 3, kind: output, shape index: {}]
  %s4 = sld [smem:[#allocation0]]
  $region45: #{tpu_custom_call.1} parent=0
    _
  %s6 = ssub.s32 1, %s4
  %s7 = scalar_select 0, %s6, %s4
  $region1: #{tpu_custom_call.1} parent=0
    #allocation2 [shape = 'u8[131072]{0}', space=vmem, size = 0x20000, scoped, tag = 'output window, operand 0']
    #allocation3 [shape = 's32[2]{0}', space=sflag, size = 0x8, scoped, tag = 'scoped memory for tpu_custom_call.1']
    %8 = vsyncpa [#allocation3], 0
    %s9 = scalar_lea.sflag [#allocation3], 1
    %10 = vsyncpa %s9, 0
    loop: start=0, step=1, limit=4
    $region2: #{tpu_custom_call.1} parent=1 // loop_pre_header
      _
    $region3: #{tpu_custom_call.1} parent=1 // loop_header
      %s12 = sphi 0, %s16
      %p13 = scmp.ge.s32.totalorder %s12, 4
      %s22 = sphi 0, %s24
      %s25 = sphi 0, %s22
      %s26 = sphi 0, %s25
      %s42 = sphi 0, %s26
      %s46 = sphi 0, %s46
      %s48 = sphi 0, %s46
      %s49 = sphi 0, %s48
      %s63 = sphi 0, %s49
      %s67 = sphi 0, %s67
      %s69 = sphi 0, %s67
      %s70 = sphi 0, %s69
      %s84 = sphi 0, %s70
      %s90 = sphi 0, %s92
      %s93 = sphi 0, %s90
      %s94 = sphi 0, %s93
      %s110 = sphi 0, %s94
    $region4: #{tpu_custom_call.1} parent=1 // loop_header_branch
      %15 = sbr.rel (%p13) target = $region8
    $region5: #{tpu_custom_call.1} parent=1 // loop_body
      %s17 = ssub.s32 %s12, 1
      %s18 = ssub.s32 %s12, 2
      %s19 = sadd.s32 %s12, 1
      %s20 = ssub.s32 %s12, %s19
      %p21 = scmp.eq.s32.totalorder %s20, 0
      %s23 = sadd.s32 %s22, 1
      %s24 = scalar_select %p21, %s22, %s23
      %p27 = pneg %p21
      %p28 = scmp.eq.s32.totalorder %s12, 1
      %p29 = por %p27, %p28
      %p30 = scmp.ne.s32.totalorder %s22, %s25
      %p31 = scmp.eq.s32.totalorder %s12, 0
      %p32 = por %p30, %p31
      %p33 = scmp.ne.s32.totalorder %s22, %s25
      %p34 = scmp.eq.s32.totalorder %s17, 1
      %p35 = por %p33, %p34
      %p36 = scmp.ne.s32.totalorder %s25, %s26
      %p37 = scmp.eq.s32.totalorder %s17, 0
      %p38 = por %p36, %p37
      %p39 = scmp.ne.s32.totalorder %s25, %s26
      %p40 = scmp.eq.s32.totalorder %s18, 1
      %p41 = por %p39, %p40
      %p43 = scmp.ne.s32.totalorder %s26, %s42
      %p44 = scmp.eq.s32.totalorder %s18, 0
      %p45 = por %p43, %p44
      %s47 = sadd.s32 %s46, 1
      %p50 = scmp.eq.s32.totalorder %s12, 1
      %p51 = scmp.ne.s32.totalorder %s46, %s48
      %p52 = scmp.eq.s32.totalorder %s12, 0
      %p53 = por %p51, %p52
      %p54 = scmp.ne.s32.totalorder %s46, %s48
      %p55 = scmp.eq.s32.totalorder %s17, 1
      %p56 = por %p54, %p55
      %p57 = scmp.ne.s32.totalorder %s48, %s49
      %p58 = scmp.eq.s32.totalorder %s17, 0
      %p59 = por %p57, %p58
      %p60 = scmp.ne.s32.totalorder %s48, %s49
      %p61 = scmp.eq.s32.totalorder %s18, 1
      %p62 = por %p60, %p61
      %p64 = scmp.ne.s32.totalorder %s49, %s63
      %p65 = scmp.eq.s32.totalorder %s18, 0
      %p66 = por %p64, %p65
      %s68 = sadd.s32 %s67, 1
      %p71 = scmp.eq.s32.totalorder %s12, 1
      %p72 = scmp.ne.s32.totalorder %s67, %s69
      %p73 = scmp.eq.s32.totalorder %s12, 0
      %p74 = por %p72, %p73
      %p75 = scmp.ne.s32.totalorder %s67, %s69
      %p76 = scmp.eq.s32.totalorder %s17, 1
      %p77 = por %p75, %p76
      %p78 = scmp.ne.s32.totalorder %s69, %s70
      %p79 = scmp.eq.s32.totalorder %s17, 0
      %p80 = por %p78, %p79
      %p81 = scmp.ne.s32.totalorder %s69, %s70
      %p82 = scmp.eq.s32.totalorder %s18, 1
      %p83 = por %p81, %p82
      %p85 = scmp.ne.s32.totalorder %s70, %s84
      %p86 = scmp.eq.s32.totalorder %s18, 0
      %p87 = por %p85, %p86
      %s88 = ssub.s32 %s12, %s19
      %p89 = scmp.eq.s32.totalorder %s88, 0
      %s91 = sadd.s32 %s90, 1
      %s92 = scalar_select %p89, %s90, %s91
      %p95 = pneg %p89
      %p96 = scmp.eq.s32.totalorder %s12, 1
      %p97 = por %p95, %p96
      %p98 = scmp.ne.s32.totalorder %s90, %s93
      %p99 = scmp.eq.s32.totalorder %s12, 0
      %p100 = por %p98, %p99
      %p101 = scmp.ne.s32.totalorder %s90, %s93
      %p102 = scmp.eq.s32.totalorder %s17, 1
      %p103 = por %p101, %p102
      %p104 = scmp.ne.s32.totalorder %s93, %s94
      %p105 = scmp.eq.s32.totalorder %s17, 0
      %p106 = por %p104, %p105
      %p107 = scmp.ne.s32.totalorder %s93, %s94
      %p108 = scmp.eq.s32.totalorder %s18, 1
      %p109 = por %p107, %p108
      %p111 = scmp.ne.s32.totalorder %s94, %s110
      %p112 = scmp.eq.s32.totalorder %s18, 0
      %p113 = por %p111, %p112
      %p114 = scmp.le.s32.totalorder 1, %s12
      %p115 = scmp.lt.s32.totalorder %s12, 3
      %p116 = pnand %p114, %p115
      %p117 = pneg %p116
      // Predicated region
      $region9: #{tpu_custom_call.1} parent=5 // pred_check
        _
      $region10: #{tpu_custom_call.1} parent=5 // pred_check_branch
        %119 = sbr.rel (%p116) target = $region12
      $region11: #{tpu_custom_call.1} parent=5 // pred_region
        %s120 = ssub.s32 %s12, 1
        // Predicated region
        $region13: #{tpu_custom_call.1} parent=11 // pred_check
          %p121 = pneg %p59
        $region14: #{tpu_custom_call.1} parent=11 // pred_check_branch
          %123 = sbr.rel (%p121) target = $region16
        $region15: #{tpu_custom_call.1} parent=11 // pred_region
          _
        $region16: #{tpu_custom_call.1} parent=11 // pred_fallthru
          _
        // Predicated region
        $region17: #{tpu_custom_call.1} parent=11 // pred_check
          %p124 = pneg %p80
        $region18: #{tpu_custom_call.1} parent=11 // pred_check_branch
          %126 = sbr.rel (%p124) target = $region20
        $region19: #{tpu_custom_call.1} parent=11 // pred_region
          _
        $region20: #{tpu_custom_call.1} parent=11 // pred_fallthru
          _
      $region12: #{tpu_custom_call.1} parent=5 // pred_fallthru
        _
      %p127 = scmp.lt.s32.totalorder %s12, 2
      // Predicated region
      $region21: #{tpu_custom_call.1} parent=5 // pred_check
        %p128 = pneg %p127
      $region22: #{tpu_custom_call.1} parent=5 // pred_check_branch
        %130 = sbr.rel (%p128) target = $region24
      $region23: #{tpu_custom_call.1} parent=5 // pred_region
        // Predicated region
        $region25: #{tpu_custom_call.1} parent=23 // pred_check
          %p131 = pneg %p32
        $region26: #{tpu_custom_call.1} parent=23 // pred_check_branch
          %133 = sbr.rel (%p131) target = $region28
        $region27: #{tpu_custom_call.1} parent=23 // pred_region
          %p134 = scmp.lt.s32.totalorder %s12, 1
          %s135 = scalar_select %p134, %s12, 1
          %s136 = smul.addr %s135, 54
          %s137 = smul.addr %s136, 4
          %s138 = scalar_lea.vmem %s0, %s137
        $region28: #{tpu_custom_call.1} parent=23 // pred_fallthru
          _
      $region24: #{tpu_custom_call.1} parent=5 // pred_fallthru
        _
      %p139 = scmp.le.s32.totalorder 1, %s12
      %p140 = scmp.lt.s32.totalorder %s12, 3
      %p141 = pnand %p139, %p140
      %p142 = pneg %p141
      // Predicated region
      $region29: #{tpu_custom_call.1} parent=5 // pred_check
        _
      $region30: #{tpu_custom_call.1} parent=5 // pred_check_branch
        %144 = sbr.rel (%p141) target = $region32
      $region31: #{tpu_custom_call.1} parent=5 // pred_region
        %s145 = ssub.s32 %s12, 1
        %p146 = scmp.lt.s32.totalorder %s17, 1
        %s147 = scalar_select %p146, %s17, 1
        %s148 = smul.addr %s147, 54
        %s149 = smul.addr %s148, 4
        %s150 = scalar_lea.vmem %s0, %s149
        %p151 = pneg %p38
        %p152 = pneg %p35
        %p153 = pneg %p59
        %p154 = pneg %p56
        %p155 = pneg %p80
        %p156 = pneg %p77
        %p157 = pneg %p106
        %p158 = pneg %p103
        %s159 = sand.u32 %s93, 1
        %s160 = scalar_lea.sflag [#allocation3], %s159
        %s161 = sand.u32 %s93, 1
        %s162 = smul.addr %s161, 128
        %s163 = scalar_lea.vmem [#allocation2], %s162
        %p164 = scmp.lt.s32.totalorder %s17, 1
        %s165 = scalar_select %p164, %s17, 1
        %s166 = smul.addr %s165, 54
        %s167 = smul.addr %s166, 4
        %s168 = scalar_lea.vmem %s0, %s167
        %v170 = vld [vmem:[%s168] sm:$0xf]
        %v171 = vld [vmem:[%s168 + $0x4] sm:$0xf]
        %v172 = vld [vmem:[%s168 + $0x8] sm:$0x1]
        %v173 = vld [vmem:[%s168 + $0xc] sm:$0xf]
        %v174 = vld [vmem:[%s168 + $0x10] sm:$0xf]
        %v175 = vld [vmem:[%s168 + $0x14] sm:$0x1]
        %v176 = vld [vmem:[%s168 + $0x18] sm:$0xf]
        %v177 = vld [vmem:[%s168 + $0x1c] sm:$0xf]
        %v178 = vld [vmem:[%s168 + $0x20] sm:$0x1]
        %v179 = vld [vmem:[%s168 + $0x24] sm:$0xf]
        %v180 = vld [vmem:[%s168 + $0x28] sm:$0xf]
        %v181 = vld [vmem:[%s168 + $0x2c] sm:$0x1]
        %v182 = vld [vmem:[%s168 + $0x30] sm:$0xf]
        %v183 = vld [vmem:[%s168 + $0x34] sm:$0xf]
        %v184 = vld [vmem:[%s168 + $0x38] sm:$0x1]
        %v185 = vld [vmem:[%s168 + $0x3c] sm:$0xf]
        %v186 = vld [vmem:[%s168 + $0x40] sm:$0xf]
        %v187 = vld [vmem:[%s168 + $0x44] sm:$0x1]
        %v188 = vld [vmem:[%s168 + $0x48] sm:$0xf]
        %v189 = vld [vmem:[%s168 + $0x4c] sm:$0xf]
        %v190 = vld [vmem:[%s168 + $0x50] sm:$0x1]
        %v191 = vld [vmem:[%s168 + $0x54] sm:$0xf]
        %v192 = vld [vmem:[%s168 + $0x58] sm:$0xf]
        %v193 = vld [vmem:[%s168 + $0x5c] sm:$0x1]
        %v194 = vld [vmem:[%s168 + $0x60] sm:$0xf]
        %v195 = vld [vmem:[%s168 + $0x64] sm:$0xf]
        %v196 = vld [vmem:[%s168 + $0x68] sm:$0x1]
        %v197 = vld [vmem:[%s168 + $0x6c] sm:$0xf]
        %v198 = vld [vmem:[%s168 + $0x70] sm:$0xf]
        %v199 = vld [vmem:[%s168 + $0x74] sm:$0x1]
        %v200 = vld [vmem:[%s168 + $0x78] sm:$0xf]
        %v201 = vld [vmem:[%s168 + $0x7c] sm:$0xf]
        %v202 = vld [vmem:[%s168 + $0x80] sm:$0x1]
        %v203 = vld [vmem:[%s168 + $0x84] sm:$0xf]
        %v204 = vld [vmem:[%s168 + $0x88] sm:$0xf]
        %v205 = vld [vmem:[%s168 + $0x8c] sm:$0x1]
        %v206 = vld [vmem:[%s168 + $0x90] sm:$0xf]
        %v207 = vld [vmem:[%s168 + $0x94] sm:$0xf]
        %v208 = vld [vmem:[%s168 + $0x98] sm:$0x1]
        %v209 = vld [vmem:[%s168 + $0x9c] sm:$0xf]
        %v210 = vld [vmem:[%s168 + $0xa0] sm:$0xf]
        %v211 = vld [vmem:[%s168 + $0xa4] sm:$0x1]
        %v212 = vld [vmem:[%s168 + $0xa8] sm:$0xf]
        %v213 = vld [vmem:[%s168 + $0xac] sm:$0xf]
        %v214 = vld [vmem:[%s168 + $0xb0] sm:$0x1]
        %v215 = vld [vmem:[%s168 + $0xb4] sm:$0xf]
        %v216 = vld [vmem:[%s168 + $0xb8] sm:$0xf]
        %v217 = vld [vmem:[%s168 + $0xbc] sm:$0x1]
        %v218 = vld [vmem:[%s168 + $0xc0] sm:$0xf]
        %v219 = vld [vmem:[%s168 + $0xc4] sm:$0xf]
        %v220 = vld [vmem:[%s168 + $0xc8] sm:$0x1]
        %v221 = vld [vmem:[%s168 + $0xcc] sm:$0xf]
        %v222 = vld [vmem:[%s168 + $0xd0] sm:$0xf]
        %v223 = vld [vmem:[%s168 + $0xd4] sm:$0x1]
        %vm224 = vsmask.f32 3328
        %vm225 = vsmask.f32 7440
        %vm226 = vmor %vm224, %vm225
        %v228 = vshrl.u32 %v170, 16
        %v230 = vrot.slane %v228, 4
        %v231 = vshll.u32 %v170, 16
        %v233 = vrot.slane %v231, 5
        %v234 = vor.u32 %v230, %v233
        %v235 = vrot.slane %v234, 4
        %v237 = vshll.u32 %v171, 16
        %v239 = vrot.slane %v237, 5
        %v240 = vsel %vm226, %v235, %v239
        %v241 = vshrl.u32 %v171, 16
        %v243 = vrot.slane %v241, 4
        %v244 = vor.u32 %v243, %v239
        %v245 = vrot.slane %v244, 4
        %v247 = vshll.u32 %v172, 16
        %v249 = vrot.slane %v247, 5
        %v250 = vsel %vm226, %v245, %v249
        %v252 = vshrl.u32 %v173, 16
        %v254 = vrot.slane %v252, 4
        %v255 = vshll.u32 %v173, 16
        %v257 = vrot.slane %v255, 5
        %v258 = vor.u32 %v254, %v257
        %v259 = vrot.slane %v258, 4
        %v261 = vshll.u32 %v174, 16
        %v263 = vrot.slane %v261, 5
        %v264 = vsel %vm226, %v259, %v263
        %v265 = vshrl.u32 %v174, 16
        %v267 = vrot.slane %v265, 4
        %v268 = vor.u32 %v267, %v263
        %v269 = vrot.slane %v268, 4
        %v271 = vshll.u32 %v175, 16
        %v273 = vrot.slane %v271, 5
        %v274 = vsel %vm226, %v269, %v273
        %v276 = vshrl.u32 %v176, 16
        %v278 = vrot.slane %v276, 4
        %v279 = vshll.u32 %v176, 16
        %v281 = vrot.slane %v279, 5
        %v282 = vor.u32 %v278, %v281
        %v283 = vrot.slane %v282, 4
        %v285 = vshll.u32 %v177, 16
        %v287 = vrot.slane %v285, 5
        %v288 = vsel %vm226, %v283, %v287
        %v289 = vshrl.u32 %v177, 16
        %v291 = vrot.slane %v289, 4
        %v292 = vor.u32 %v291, %v287
        %v293 = vrot.slane %v292, 4
        %v295 = vshll.u32 %v178, 16
        %v297 = vrot.slane %v295, 5
        %v298 = vsel %vm226, %v293, %v297
        %v300 = vshrl.u32 %v179, 16
        %v302 = vrot.slane %v300, 4
        %v303 = vshll.u32 %v179, 16
        %v305 = vrot.slane %v303, 5
        %v306 = vor.u32 %v302, %v305
        %v307 = vrot.slane %v306, 4
        %v309 = vshll.u32 %v180, 16
        %v311 = vrot.slane %v309, 5
        %v312 = vsel %vm226, %v307, %v311
        %v313 = vshrl.u32 %v180, 16
        %v315 = vrot.slane %v313, 4
        %v316 = vor.u32 %v315, %v311
        %v317 = vrot.slane %v316, 4
        %v319 = vshll.u32 %v181, 16
        %v321 = vrot.slane %v319, 5
        %v322 = vsel %vm226, %v317, %v321
        %v324 = vshrl.u32 %v182, 16
        %v326 = vrot.slane %v324, 4
        %v327 = vshll.u32 %v182, 16
        %v329 = vrot.slane %v327, 5
        %v330 = vor.u32 %v326, %v329
        %v331 = vrot.slane %v330, 4
        %v333 = vshll.u32 %v183, 16
        %v335 = vrot.slane %v333, 5
        %v336 = vsel %vm226, %v331, %v335
        %v337 = vshrl.u32 %v183, 16
        %v339 = vrot.slane %v337, 4
        %v340 = vor.u32 %v339, %v335
        %v341 = vrot.slane %v340, 4
        %v343 = vshll.u32 %v184, 16
        %v345 = vrot.slane %v343, 5
        %v346 = vsel %vm226, %v341, %v345
        %v348 = vshrl.u32 %v185, 16
        %v350 = vrot.slane %v348, 4
        %v351 = vshll.u32 %v185, 16
        %v353 = vrot.slane %v351, 5
        %v354 = vor.u32 %v350, %v353
        %v355 = vrot.slane %v354, 4
        %v357 = vshll.u32 %v186, 16
        %v359 = vrot.slane %v357, 5
        %v360 = vsel %vm226, %v355, %v359
        %v361 = vshrl.u32 %v186, 16
        %v363 = vrot.slane %v361, 4
        %v364 = vor.u32 %v363, %v359
        %v365 = vrot.slane %v364, 4
        %v367 = vshll.u32 %v187, 16
        %v369 = vrot.slane %v367, 5
        %v370 = vsel %vm226, %v365, %v369
        %v372 = vshrl.u32 %v188, 16
        %v374 = vrot.slane %v372, 4
        %v375 = vshll.u32 %v188, 16
        %v377 = vrot.slane %v375, 5
        %v378 = vor.u32 %v374, %v377
        %v379 = vrot.slane %v378, 4
        %v381 = vshll.u32 %v189, 16
        %v383 = vrot.slane %v381, 5
        %v384 = vsel %vm226, %v379, %v383
        %v385 = vshrl.u32 %v189, 16
        %v387 = vrot.slane %v385, 4
        %v388 = vor.u32 %v387, %v383
        %v389 = vrot.slane %v388, 4
        %v391 = vshll.u32 %v190, 16
        %v393 = vrot.slane %v391, 5
        %v394 = vsel %vm226, %v389, %v393
        %v396 = vshrl.u32 %v191, 16
        %v398 = vrot.slane %v396, 4
        %v399 = vshll.u32 %v191, 16
        %v401 = vrot.slane %v399, 5
        %v402 = vor.u32 %v398, %v401
        %v403 = vrot.slane %v402, 4
        %v405 = vshll.u32 %v192, 16
        %v407 = vrot.slane %v405, 5
        %v408 = vsel %vm226, %v403, %v407
        %v409 = vshrl.u32 %v192, 16
        %v411 = vrot.slane %v409, 4
        %v412 = vor.u32 %v411, %v407
        %v413 = vrot.slane %v412, 4
        %v415 = vshll.u32 %v193, 16
        %v417 = vrot.slane %v415, 5
        %v418 = vsel %vm226, %v413, %v417
        %v420 = vshrl.u32 %v194, 16
        %v422 = vrot.slane %v420, 4
        %v423 = vshll.u32 %v194, 16
        %v425 = vrot.slane %v423, 5
        %v426 = vor.u32 %v422, %v425
        %v427 = vrot.slane %v426, 4
        %v429 = vshll.u32 %v195, 16
        %v431 = vrot.slane %v429, 5
        %v432 = vsel %vm226, %v427, %v431
        %v433 = vshrl.u32 %v195, 16
        %v435 = vrot.slane %v433, 4
        %v436 = vor.u32 %v435, %v431
        %v437 = vrot.slane %v436, 4
        %v439 = vshll.u32 %v196, 16
        %v441 = vrot.slane %v439, 5
        %v442 = vsel %vm226, %v437, %v441
        %v444 = vshrl.u32 %v197, 16
        %v446 = vrot.slane %v444, 4
        %v447 = vshll.u32 %v197, 16
        %v449 = vrot.slane %v447, 5
        %v450 = vor.u32 %v446, %v449
        %v451 = vrot.slane %v450, 4
        %v453 = vshll.u32 %v198, 16
        %v455 = vrot.slane %v453, 5
        %v456 = vsel %vm226, %v451, %v455
        %v457 = vshrl.u32 %v198, 16
        %v459 = vrot.slane %v457, 4
        %v460 = vor.u32 %v459, %v455
        %v461 = vrot.slane %v460, 4
        %v463 = vshll.u32 %v199, 16
        %v465 = vrot.slane %v463, 5
        %v466 = vsel %vm226, %v461, %v465
        %v468 = vshrl.u32 %v200, 16
        %v470 = vrot.slane %v468, 4
        %v471 = vshll.u32 %v200, 16
        %v473 = vrot.slane %v471, 5
        %v474 = vor.u32 %v470, %v473
        %v475 = vrot.slane %v474, 4
        %v477 = vshll.u32 %v201, 16
        %v479 = vrot.slane %v477, 5
        %v480 = vsel %vm226, %v475, %v479
        %v481 = vshrl.u32 %v201, 16
        %v483 = vrot.slane %v481, 4
        %v484 = vor.u32 %v483, %v479
        %v485 = vrot.slane %v484, 4
        %v487 = vshll.u32 %v202, 16
        %v489 = vrot.slane %v487, 5
        %v490 = vsel %vm226, %v485, %v489
        %v492 = vshrl.u32 %v203, 16
        %v494 = vrot.slane %v492, 4
        %v495 = vshll.u32 %v203, 16
        %v497 = vrot.slane %v495, 5
        %v498 = vor.u32 %v494, %v497
        %v499 = vrot.slane %v498, 4
        %v501 = vshll.u32 %v204, 16
        %v503 = vrot.slane %v501, 5
        %v504 = vsel %vm226, %v499, %v503
        %v505 = vshrl.u32 %v204, 16
        %v507 = vrot.slane %v505, 4
        %v508 = vor.u32 %v507, %v503
        %v509 = vrot.slane %v508, 4
        %v511 = vshll.u32 %v205, 16
        %v513 = vrot.slane %v511, 5
        %v514 = vsel %vm226, %v509, %v513
        %v516 = vshrl.u32 %v206, 16
        %v518 = vrot.slane %v516, 4
        %v519 = vshll.u32 %v206, 16
        %v521 = vrot.slane %v519, 5
        %v522 = vor.u32 %v518, %v521
        %v523 = vrot.slane %v522, 4
        %v525 = vshll.u32 %v207, 16
        %v527 = vrot.slane %v525, 5
        %v528 = vsel %vm226, %v523, %v527
        %v529 = vshrl.u32 %v207, 16
        %v531 = vrot.slane %v529, 4
        %v532 = vor.u32 %v531, %v527
        %v533 = vrot.slane %v532, 4
        %v535 = vshll.u32 %v208, 16
        %v537 = vrot.slane %v535, 5
        %v538 = vsel %vm226, %v533, %v537
        %v540 = vshrl.u32 %v209, 16
        %v542 = vrot.slane %v540, 4
        %v543 = vshll.u32 %v209, 16
        %v545 = vrot.slane %v543, 5
        %v546 = vor.u32 %v542, %v545
        %v547 = vrot.slane %v546, 4
        %v549 = vshll.u32 %v210, 16
        %v551 = vrot.slane %v549, 5
        %v552 = vsel %vm226, %v547, %v551
        %v553 = vshrl.u32 %v210, 16
        %v555 = vrot.slane %v553, 4
        %v556 = vor.u32 %v555, %v551
        %v557 = vrot.slane %v556, 4
        %v559 = vshll.u32 %v211, 16
        %v561 = vrot.slane %v559, 5
        %v562 = vsel %vm226, %v557, %v561
        %v564 = vshrl.u32 %v212, 16
        %v566 = vrot.slane %v564, 4
        %v567 = vshll.u32 %v212, 16
        %v569 = vrot.slane %v567, 5
        %v570 = vor.u32 %v566, %v569
        %v571 = vrot.slane %v570, 4
        %v573 = vshll.u32 %v213, 16
        %v575 = vrot.slane %v573, 5
        %v576 = vsel %vm226, %v571, %v575
        %v577 = vshrl.u32 %v213, 16
        %v579 = vrot.slane %v577, 4
        %v580 = vor.u32 %v579, %v575
        %v581 = vrot.slane %v580, 4
        %v583 = vshll.u32 %v214, 16
        %v585 = vrot.slane %v583, 5
        %v586 = vsel %vm226, %v581, %v585
        %v588 = vshrl.u32 %v215, 16
        %v590 = vrot.slane %v588, 4
        %v591 = vshll.u32 %v215, 16
        %v593 = vrot.slane %v591, 5
        %v594 = vor.u32 %v590, %v593
        %v595 = vrot.slane %v594, 4
        %v597 = vshll.u32 %v216, 16
        %v599 = vrot.slane %v597, 5
        %v600 = vsel %vm226, %v595, %v599
        %v601 = vshrl.u32 %v216, 16
        %v603 = vrot.slane %v601, 4
        %v604 = vor.u32 %v603, %v599
        %v605 = vrot.slane %v604, 4
        %v607 = vshll.u32 %v217, 16
        %v609 = vrot.slane %v607, 5
        %v610 = vsel %vm226, %v605, %v609
        %vm659 = vcmask 1042432
        %vm660 = vcmask 1046532
        %vm661 = vmor %vm659, %vm660
        %v662 = vrot.slane %v170, 5
        %v663 = vrot.slane %v662, 4
        %v664 = vrot.slane %v171, 5
        %v665 = vsel %vm661, %v663, %v664
        %v666 = vrot.slane %v664, 4
        %v667 = vrot.slane %v172, 5
        %v668 = vsel %vm661, %v666, %v667
        %v669 = vrot.slane %v173, 5
        %v670 = vrot.slane %v669, 4
        %v671 = vrot.slane %v174, 5
        %v672 = vsel %vm661, %v670, %v671
        %v673 = vrot.slane %v671, 4
        %v674 = vrot.slane %v175, 5
        %v675 = vsel %vm661, %v673, %v674
        %v676 = vrot.slane %v176, 5
        %v677 = vrot.slane %v676, 4
        %v678 = vrot.slane %v177, 5
        %v679 = vsel %vm661, %v677, %v678
        %v680 = vrot.slane %v678, 4
        %v681 = vrot.slane %v178, 5
        %v682 = vsel %vm661, %v680, %v681
        %v683 = vrot.slane %v179, 5
        %v684 = vrot.slane %v683, 4
        %v685 = vrot.slane %v180, 5
        %v686 = vsel %vm661, %v684, %v685
        %v687 = vrot.slane %v685, 4
        %v688 = vrot.slane %v181, 5
        %v689 = vsel %vm661, %v687, %v688
        %v690 = vrot.slane %v182, 5
        %v691 = vrot.slane %v690, 4
        %v692 = vrot.slane %v183, 5
        %v693 = vsel %vm661, %v691, %v692
        %v694 = vrot.slane %v692, 4
        %v695 = vrot.slane %v184, 5
        %v696 = vsel %vm661, %v694, %v695
        %v697 = vrot.slane %v185, 5
        %v698 = vrot.slane %v697, 4
        %v699 = vrot.slane %v186, 5
        %v700 = vsel %vm661, %v698, %v699
        %v701 = vrot.slane %v699, 4
        %v702 = vrot.slane %v187, 5
        %v703 = vsel %vm661, %v701, %v702
        %v704 = vrot.slane %v188, 5
        %v705 = vrot.slane %v704, 4
        %v706 = vrot.slane %v189, 5
        %v707 = vsel %vm661, %v705, %v706
        %v708 = vrot.slane %v706, 4
        %v709 = vrot.slane %v190, 5
        %v710 = vsel %vm661, %v708, %v709
        %v711 = vrot.slane %v191, 5
        %v712 = vrot.slane %v711, 4
        %v713 = vrot.slane %v192, 5
        %v714 = vsel %vm661, %v712, %v713
        %v715 = vrot.slane %v713, 4
        %v716 = vrot.slane %v193, 5
        %v717 = vsel %vm661, %v715, %v716
        %v718 = vrot.slane %v194, 5
        %v719 = vrot.slane %v718, 4
        %v720 = vrot.slane %v195, 5
        %v721 = vsel %vm661, %v719, %v720
        %v722 = vrot.slane %v720, 4
        %v723 = vrot.slane %v196, 5
        %v724 = vsel %vm661, %v722, %v723
        %v725 = vrot.slane %v197, 5
        %v726 = vrot.slane %v725, 4
        %v727 = vrot.slane %v198, 5
        %v728 = vsel %vm661, %v726, %v727
        %v729 = vrot.slane %v727, 4
        %v730 = vrot.slane %v199, 5
        %v731 = vsel %vm661, %v729, %v730
        %v732 = vrot.slane %v200, 5
        %v733 = vrot.slane %v732, 4
        %v734 = vrot.slane %v201, 5
        %v735 = vsel %vm661, %v733, %v734
        %v736 = vrot.slane %v734, 4
        %v737 = vrot.slane %v202, 5
        %v738 = vsel %vm661, %v736, %v737
        %v739 = vrot.slane %v203, 5
        %v740 = vrot.slane %v739, 4
        %v741 = vrot.slane %v204, 5
        %v742 = vsel %vm661, %v740, %v741
        %v743 = vrot.slane %v741, 4
        %v744 = vrot.slane %v205, 5
        %v745 = vsel %vm661, %v743, %v744
        %v746 = vrot.slane %v206, 5
        %v747 = vrot.slane %v746, 4
        %v748 = vrot.slane %v207, 5
        %v749 = vsel %vm661, %v747, %v748
        %v750 = vrot.slane %v748, 4
        %v751 = vrot.slane %v208, 5
        %v752 = vsel %vm661, %v750, %v751
        %v753 = vrot.slane %v209, 5
        %v754 = vrot.slane %v753, 4
        %v755 = vrot.slane %v210, 5
        %v756 = vsel %vm661, %v754, %v755
        %v757 = vrot.slane %v755, 4
        %v758 = vrot.slane %v211, 5
        %v759 = vsel %vm661, %v757, %v758
        %v760 = vrot.slane %v212, 5
        %v761 = vrot.slane %v760, 4
        %v762 = vrot.slane %v213, 5
        %v763 = vsel %vm661, %v761, %v762
        %v764 = vrot.slane %v762, 4
        %v765 = vrot.slane %v214, 5
        %v766 = vsel %vm661, %v764, %v765
        %v767 = vrot.slane %v215, 5
        %v768 = vrot.slane %v767, 4
        %v769 = vrot.slane %v216, 5
        %v770 = vsel %vm661, %v768, %v769
        %v771 = vrot.slane %v769, 4
        %v772 = vrot.slane %v217, 5
        %v773 = vsel %vm661, %v771, %v772
        %v775 = vshrl.u32 %v218, 16
        %v777 = vrot.slane %v775, 4
        %v778 = vshll.u32 %v218, 16
        %v780 = vrot.slane %v778, 5
        %v781 = vor.u32 %v777, %v780
        %v782 = vrot.slane %v781, 4
        %v784 = vshll.u32 %v219, 16
        %v786 = vrot.slane %v784, 5
        %v787 = vsel %vm226, %v782, %v786
        %v788 = vshrl.u32 %v219, 16
        %v790 = vrot.slane %v788, 4
        %v791 = vor.u32 %v790, %v786
        %v792 = vrot.slane %v791, 4
        %v794 = vshll.u32 %v220, 16
        %v796 = vrot.slane %v794, 5
        %v797 = vsel %vm226, %v792, %v796
        %v801 = vrot.slane %v218, 5
        %v802 = vrot.slane %v801, 4
        %v803 = vrot.slane %v219, 5
        %v804 = vsel %vm661, %v802, %v803
        %v805 = vrot.slane %v803, 4
        %v806 = vrot.slane %v220, 5
        %v807 = vsel %vm661, %v805, %v806
        %v809 = vshrl.u32 %v221, 16
        %v811 = vrot.slane %v809, 4
        %v812 = vshll.u32 %v221, 16
        %v814 = vrot.slane %v812, 5
        %v815 = vor.u32 %v811, %v814
        %v816 = vrot.slane %v815, 4
        %v818 = vshll.u32 %v222, 16
        %v820 = vrot.slane %v818, 5
        %v821 = vsel %vm226, %v816, %v820
        %v822 = vshrl.u32 %v222, 16
        %v824 = vrot.slane %v822, 4
        %v825 = vor.u32 %v824, %v820
        %v826 = vrot.slane %v825, 4
        %v828 = vshll.u32 %v223, 16
        %v830 = vrot.slane %v828, 5
        %v831 = vsel %vm226, %v826, %v830
        %v835 = vrot.slane %v221, 5
        %v836 = vrot.slane %v835, 4
        %v837 = vrot.slane %v222, 5
        %v838 = vsel %vm661, %v836, %v837
        %v839 = vrot.slane %v837, 4
        %v840 = vrot.slane %v223, 5
        %v841 = vsel %vm661, %v839, %v840
        %v842 = vunpack.c.l.b16 %v170
        %v843 = vunpack.c.l.b16 %v171
        %v844 = vunpack.c.l.b16 %v173
        %v845 = vunpack.c.l.b16 %v174
        %v846 = vunpack.c.l.b16 %v176
        %v847 = vunpack.c.l.b16 %v177
        %v848 = vunpack.c.l.b16 %v179
        %v849 = vunpack.c.l.b16 %v180
        %v850 = vunpack.c.l.b16 %v182
        %v851 = vunpack.c.l.b16 %v183
        %v852 = vunpack.c.l.b16 %v185
        %v853 = vunpack.c.l.b16 %v186
        %v854 = vunpack.c.l.b16 %v188
        %v855 = vunpack.c.l.b16 %v189
        %v856 = vunpack.c.l.b16 %v191
        %v857 = vunpack.c.l.b16 %v192
        %v858 = vunpack.c.l.b16 %v194
        %v859 = vunpack.c.l.b16 %v195
        %v860 = vunpack.c.l.b16 %v197
        %v861 = vunpack.c.l.b16 %v198
        %v862 = vunpack.c.l.b16 %v200
        %v863 = vunpack.c.l.b16 %v201
        %v864 = vunpack.c.l.b16 %v203
        %v865 = vunpack.c.l.b16 %v204
        %v866 = vunpack.c.l.b16 %v206
        %v867 = vunpack.c.l.b16 %v207
        %v868 = vunpack.c.l.b16 %v209
        %v869 = vunpack.c.l.b16 %v210
        %v870 = vunpack.c.l.b16 %v212
        %v871 = vunpack.c.l.b16 %v213
        %v872 = vunpack.c.l.b16 %v215
        %v873 = vunpack.c.l.b16 %v216
        %v874 = vpack.c.b16 %v843, %v842
        %v875 = vpack.c.b16 %v845, %v844
        %v876 = vpack.c.b16 %v847, %v846
        %v877 = vpack.c.b16 %v849, %v848
        %v878 = vpack.c.b16 %v851, %v850
        %v879 = vpack.c.b16 %v853, %v852
        %v880 = vpack.c.b16 %v855, %v854
        %v881 = vpack.c.b16 %v857, %v856
        %v882 = vpack.c.b16 %v859, %v858
        %v883 = vpack.c.b16 %v861, %v860
        %v884 = vpack.c.b16 %v863, %v862
        %v885 = vpack.c.b16 %v865, %v864
        %v886 = vpack.c.b16 %v867, %v866
        %v887 = vpack.c.b16 %v869, %v868
        %v888 = vpack.c.b16 %v871, %v870
        %v889 = vpack.c.b16 %v873, %v872
        %v906 = vunpack.c.l.b16 %v240
        %v907 = vunpack.c.l.b16 %v250
        %v908 = vunpack.c.l.b16 %v264
        %v909 = vunpack.c.l.b16 %v274
        %v910 = vunpack.c.l.b16 %v288
        %v911 = vunpack.c.l.b16 %v298
        %v912 = vunpack.c.l.b16 %v312
        %v913 = vunpack.c.l.b16 %v322
        %v914 = vunpack.c.l.b16 %v336
        %v915 = vunpack.c.l.b16 %v346
        %v916 = vunpack.c.l.b16 %v360
        %v917 = vunpack.c.l.b16 %v370
        %v918 = vunpack.c.l.b16 %v384
        %v919 = vunpack.c.l.b16 %v394
        %v920 = vunpack.c.l.b16 %v408
        %v921 = vunpack.c.l.b16 %v418
        %v922 = vunpack.c.l.b16 %v432
        %v923 = vunpack.c.l.b16 %v442
        %v924 = vunpack.c.l.b16 %v456
        %v925 = vunpack.c.l.b16 %v466
        %v926 = vunpack.c.l.b16 %v480
        %v927 = vunpack.c.l.b16 %v490
        %v928 = vunpack.c.l.b16 %v504
        %v929 = vunpack.c.l.b16 %v514
        %v930 = vunpack.c.l.b16 %v528
        %v931 = vunpack.c.l.b16 %v538
        %v932 = vunpack.c.l.b16 %v552
        %v933 = vunpack.c.l.b16 %v562
        %v934 = vunpack.c.l.b16 %v576
        %v935 = vunpack.c.l.b16 %v586
        %v936 = vunpack.c.l.b16 %v600
        %v937 = vunpack.c.l.b16 %v610
        %v938 = vpack.c.b16 %v907, %v906
        %v939 = vpack.c.b16 %v909, %v908
        %v940 = vpack.c.b16 %v911, %v910
        %v941 = vpack.c.b16 %v913, %v912
        %v942 = vpack.c.b16 %v915, %v914
        %v943 = vpack.c.b16 %v917, %v916
        %v944 = vpack.c.b16 %v919, %v918
        %v945 = vpack.c.b16 %v921, %v920
        %v946 = vpack.c.b16 %v923, %v922
        %v947 = vpack.c.b16 %v925, %v924
        %v948 = vpack.c.b16 %v927, %v926
        %v949 = vpack.c.b16 %v929, %v928
        %v950 = vpack.c.b16 %v931, %v930
        %v951 = vpack.c.b16 %v933, %v932
        %v952 = vpack.c.b16 %v935, %v934
        %v953 = vpack.c.b16 %v937, %v936
        %v970 = vunpack.c.l.b16 %v665
        %v971 = vunpack.c.l.b16 %v668
        %v972 = vunpack.c.l.b16 %v672
        %v973 = vunpack.c.l.b16 %v675
        %v974 = vunpack.c.l.b16 %v679
        %v975 = vunpack.c.l.b16 %v682
        %v976 = vunpack.c.l.b16 %v686
        %v977 = vunpack.c.l.b16 %v689
        %v978 = vunpack.c.l.b16 %v693
        %v979 = vunpack.c.l.b16 %v696
        %v980 = vunpack.c.l.b16 %v700
        %v981 = vunpack.c.l.b16 %v703
        %v982 = vunpack.c.l.b16 %v707
        %v983 = vunpack.c.l.b16 %v710
        %v984 = vunpack.c.l.b16 %v714
        %v985 = vunpack.c.l.b16 %v717
        %v986 = vunpack.c.l.b16 %v721
        %v987 = vunpack.c.l.b16 %v724
        %v988 = vunpack.c.l.b16 %v728
        %v989 = vunpack.c.l.b16 %v731
        %v990 = vunpack.c.l.b16 %v735
        %v991 = vunpack.c.l.b16 %v738
        %v992 = vunpack.c.l.b16 %v742
        %v993 = vunpack.c.l.b16 %v745
        %v994 = vunpack.c.l.b16 %v749
        %v995 = vunpack.c.l.b16 %v752
        %v996 = vunpack.c.l.b16 %v756
        %v997 = vunpack.c.l.b16 %v759
        %v998 = vunpack.c.l.b16 %v763
        %v999 = vunpack.c.l.b16 %v766
        %v1000 = vunpack.c.l.b16 %v770
        %v1001 = vunpack.c.l.b16 %v773
        %v1002 = vpack.c.b16 %v971, %v970
        %v1003 = vpack.c.b16 %v973, %v972
        %v1004 = vpack.c.b16 %v975, %v974
        %v1005 = vpack.c.b16 %v977, %v976
        %v1006 = vpack.c.b16 %v979, %v978
        %v1007 = vpack.c.b16 %v981, %v980
        %v1008 = vpack.c.b16 %v983, %v982
        %v1009 = vpack.c.b16 %v985, %v984
        %v1010 = vpack.c.b16 %v987, %v986
        %v1011 = vpack.c.b16 %v989, %v988
        %v1012 = vpack.c.b16 %v991, %v990
        %v1013 = vpack.c.b16 %v993, %v992
        %v1014 = vpack.c.b16 %v995, %v994
        %v1015 = vpack.c.b16 %v997, %v996
        %v1016 = vpack.c.b16 %v999, %v998
        %v1017 = vpack.c.b16 %v1001, %v1000
        %v1034 = vunpack.c.l.b16 %v218
        %v1035 = vunpack.c.l.b16 %v219
        %v1036 = vpack.c.b16 %v1035, %v1034
        %v1038 = vunpack.c.l.b16 %v787
        %v1039 = vunpack.c.l.b16 %v797
        %v1040 = vpack.c.b16 %v1039, %v1038
        %v1042 = vunpack.c.l.b16 %v804
        %v1043 = vunpack.c.l.b16 %v807
        %v1044 = vpack.c.b16 %v1043, %v1042
        %v1046 = vunpack.c.l.b16 %v221
        %v1047 = vunpack.c.l.b16 %v222
        %v1048 = vpack.c.b16 %v1047, %v1046
        %v1050 = vunpack.c.l.b16 %v821
        %v1051 = vunpack.c.l.b16 %v831
        %v1052 = vpack.c.b16 %v1051, %v1050
        %v1054 = vunpack.c.l.b16 %v838
        %v1055 = vunpack.c.l.b16 %v841
        %v1056 = vpack.c.b16 %v1055, %v1054
        %v1058 = vld [vmem:[%s1] sm:$0xf]
        %v1059 = vld [vmem:[%s1 + $0x4] sm:$0xf]
        %v1060 = vld [vmem:[%s1 + $0x8] sm:$0xf]
        %v1061 = vld [vmem:[%s1 + $0xc] sm:$0xf]
        %v1062 = vld [vmem:[%s1 + $0x10] sm:$0xf]
        %v1063 = vld [vmem:[%s1 + $0x14] sm:$0xf]
        %v1064 = vld [vmem:[%s1 + $0x18] sm:$0xf]
        %v1065 = vld [vmem:[%s1 + $0x1c] sm:$0xf]
        %v1066 = vld [vmem:[%s1 + $0x20] sm:$0xf]
        %v1067 = vld [vmem:[%s1 + $0x24] sm:$0xf]
        %v1068 = vld [vmem:[%s1 + $0x28] sm:$0xf]
        %v1069 = vld [vmem:[%s1 + $0x2c] sm:$0xf]
        %v1070 = vld [vmem:[%s1 + $0x30] sm:$0xf]
        %v1071 = vld [vmem:[%s1 + $0x34] sm:$0xf]
        %v1072 = vld [vmem:[%s1 + $0x38] sm:$0xf]
        %v1073 = vld [vmem:[%s1 + $0x3c] sm:$0xf]
        %v1074 = vld [vmem:[%s1 + $0x40] sm:$0xf]
        %v1075 = vld [vmem:[%s1 + $0x44] sm:$0xf]
        %v1076 = vld [vmem:[%s1 + $0x48] sm:$0xf]
        %v1077 = vld [vmem:[%s1 + $0x4c] sm:$0xf]
        %v1078 = vld [vmem:[%s1 + $0x50] sm:$0xf]
        %v1079 = vld [vmem:[%s1 + $0x54] sm:$0xf]
        %v1080 = vld [vmem:[%s1 + $0x58] sm:$0xf]
        %v1081 = vld [vmem:[%s1 + $0x5c] sm:$0xf]
        %v1082 = vld [vmem:[%s1 + $0x60] sm:$0xf]
        %v1083 = vld [vmem:[%s1 + $0x64] sm:$0xf]
        %v1084 = vld [vmem:[%s1 + $0x68] sm:$0xf]
        %v1085 = vld [vmem:[%s1 + $0x6c] sm:$0xf]
        %v1086 = vld [vmem:[%s1 + $0x70] sm:$0xf]
        %v1087 = vld [vmem:[%s1 + $0x74] sm:$0xf]
        %v1088 = vld [vmem:[%s1 + $0x78] sm:$0xf]
        %v1089 = vld [vmem:[%s1 + $0x7c] sm:$0xf]
        %v1090 = vld [vmem:[%s1 + $0x80] sm:$0xf]
        %v1091 = vld [vmem:[%s1 + $0x84] sm:$0xf]
        %v1092 = vld [vmem:[%s1 + $0x88] sm:$0xf]
        %v1093 = vld [vmem:[%s1 + $0x8c] sm:$0xf]
        %v1094 = vld [vmem:[%s1 + $0x90] sm:$0xf]
        %v1095 = vld [vmem:[%s1 + $0x94] sm:$0xf]
        %v1096 = vld [vmem:[%s1 + $0x98] sm:$0xf]
        %v1097 = vld [vmem:[%s1 + $0x9c] sm:$0xf]
        %v1098 = vld [vmem:[%s1 + $0xa0] sm:$0xf]
        %v1099 = vld [vmem:[%s1 + $0xa4] sm:$0xf]
        %v1100 = vld [vmem:[%s1 + $0xa8] sm:$0xf]
        %v1101 = vld [vmem:[%s1 + $0xac] sm:$0xf]
        %v1102 = vld [vmem:[%s1 + $0xb0] sm:$0xf]
        %v1103 = vld [vmem:[%s1 + $0xb4] sm:$0xf]
        %v1104 = vld [vmem:[%s1 + $0xb8] sm:$0xf]
        %v1105 = vld [vmem:[%s1 + $0xbc] sm:$0xf]
        %v1106 = vld [vmem:[%s1 + $0xc0] sm:$0xf]
        %v1107 = vld [vmem:[%s1 + $0xc4] sm:$0xf]
        %v1108 = vld [vmem:[%s1 + $0xc8] sm:$0xf]
        %v1109 = vld [vmem:[%s1 + $0xcc] sm:$0xf]
        %v1110 = vld [vmem:[%s1 + $0xd0] sm:$0xf]
        %v1111 = vld [vmem:[%s1 + $0xd4] sm:$0xf]
        %v1112 = vld [vmem:[%s1 + $0xd8] sm:$0xf]
        %v1113 = vld [vmem:[%s1 + $0xdc] sm:$0xf]
        %v1114 = vld [vmem:[%s1 + $0xe0] sm:$0xf]
        %v1115 = vld [vmem:[%s1 + $0xe4] sm:$0xf]
        %v1116 = vld [vmem:[%s1 + $0xe8] sm:$0xf]
        %v1117 = vld [vmem:[%s1 + $0xec] sm:$0xf]
        %v1118 = vld [vmem:[%s1 + $0xf0] sm:$0xf]
        %v1119 = vld [vmem:[%s1 + $0xf4] sm:$0xf]
        %v1120 = vld [vmem:[%s1 + $0xf8] sm:$0xf]
        %v1121 = vld [vmem:[%s1 + $0xfc] sm:$0xf]
        %v1122 = vld [vmem:[%s1 + $0x100] sm:$0xf]
        %v1123 = vld [vmem:[%s1 + $0x104] sm:$0xf]
        %v1124 = vld [vmem:[%s1 + $0x108] sm:$0xf]
        %v1125 = vld [vmem:[%s1 + $0x10c] sm:$0xf]
        %v1126 = vld [vmem:[%s1 + $0x110] sm:$0xf]
        %v1127 = vld [vmem:[%s1 + $0x114] sm:$0xf]
        %v1128 = vld [vmem:[%s1 + $0x118] sm:$0xf]
        %v1129 = vld [vmem:[%s1 + $0x11c] sm:$0xf]
        %v1130 = vld [vmem:[%s1 + $0x120] sm:$0xf]
        %v1131 = vld [vmem:[%s1 + $0x124] sm:$0xf]
        %v1132 = vld [vmem:[%s1 + $0x128] sm:$0xf]
        %v1133 = vld [vmem:[%s1 + $0x12c] sm:$0xf]
        %v1134 = vld [vmem:[%s1 + $0x130] sm:$0xf]
        %v1135 = vld [vmem:[%s1 + $0x134] sm:$0xf]
        %v1136 = vld [vmem:[%s1 + $0x138] sm:$0xf]
        %v1137 = vld [vmem:[%s1 + $0x13c] sm:$0xf]
        %v1138 = vld [vmem:[%s1 + $0x140] sm:$0xf]
        %v1139 = vld [vmem:[%s1 + $0x144] sm:$0xf]
        %v1140 = vld [vmem:[%s1 + $0x148] sm:$0xf]
        %v1141 = vld [vmem:[%s1 + $0x14c] sm:$0xf]
        %v1142 = vld [vmem:[%s1 + $0x150] sm:$0xf]
        %v1143 = vld [vmem:[%s1 + $0x154] sm:$0xf]
        %v1144 = vld [vmem:[%s1 + $0x158] sm:$0xf]
        %v1145 = vld [vmem:[%s1 + $0x15c] sm:$0xf]
        %v1146 = vld [vmem:[%s1 + $0x160] sm:$0xf]
        %v1147 = vld [vmem:[%s1 + $0x164] sm:$0xf]
        %v1148 = vld [vmem:[%s1 + $0x168] sm:$0xf]
        %v1149 = vld [vmem:[%s1 + $0x16c] sm:$0xf]
        %v1150 = vld [vmem:[%s1 + $0x170] sm:$0xf]
        %v1151 = vld [vmem:[%s1 + $0x174] sm:$0xf]
        %v1152 = vld [vmem:[%s1 + $0x178] sm:$0xf]
        %v1153 = vld [vmem:[%s1 + $0x17c] sm:$0xf]
        %v1154 = vld [vmem:[%s1 + $0x180] sm:$0xf]
        %v1155 = vld [vmem:[%s1 + $0x184] sm:$0xf]
        %v1156 = vld [vmem:[%s1 + $0x188] sm:$0xf]
        %v1157 = vld [vmem:[%s1 + $0x18c] sm:$0xf]
        %v1158 = vld [vmem:[%s1 + $0x190] sm:$0xf]
        %v1159 = vld [vmem:[%s1 + $0x194] sm:$0xf]
        %v1160 = vld [vmem:[%s1 + $0x198] sm:$0xf]
        %v1161 = vld [vmem:[%s1 + $0x19c] sm:$0xf]
        %v1162 = vld [vmem:[%s1 + $0x1a0] sm:$0xf]
        %v1163 = vld [vmem:[%s1 + $0x1a4] sm:$0xf]
        %v1164 = vld [vmem:[%s1 + $0x1a8] sm:$0xf]
        %v1165 = vld [vmem:[%s1 + $0x1ac] sm:$0xf]
        %v1166 = vld [vmem:[%s1 + $0x1b0] sm:$0xf]
        %v1167 = vld [vmem:[%s1 + $0x1b4] sm:$0xf]
        %v1168 = vld [vmem:[%s1 + $0x1b8] sm:$0xf]
        %v1169 = vld [vmem:[%s1 + $0x1bc] sm:$0xf]
        %v1170 = vld [vmem:[%s1 + $0x1c0] sm:$0xf]
        %v1171 = vld [vmem:[%s1 + $0x1c4] sm:$0xf]
        %v1172 = vld [vmem:[%s1 + $0x1c8] sm:$0xf]
        %v1173 = vld [vmem:[%s1 + $0x1cc] sm:$0xf]
        %v1174 = vld [vmem:[%s1 + $0x1d0] sm:$0xf]
        %v1175 = vld [vmem:[%s1 + $0x1d4] sm:$0xf]
        %v1176 = vld [vmem:[%s1 + $0x1d8] sm:$0xf]
        %v1177 = vld [vmem:[%s1 + $0x1dc] sm:$0xf]
        %v1178 = vld [vmem:[%s1 + $0x1e0] sm:$0xf]
        %v1179 = vld [vmem:[%s1 + $0x1e4] sm:$0xf]
        %v1180 = vld [vmem:[%s1 + $0x1e8] sm:$0xf]
        %v1181 = vld [vmem:[%s1 + $0x1ec] sm:$0xf]
        %v1182 = vld [vmem:[%s1 + $0x1f0] sm:$0xf]
        %v1183 = vld [vmem:[%s1 + $0x1f4] sm:$0xf]
        %v1184 = vld [vmem:[%s1 + $0x1f8] sm:$0xf]
        %v1185 = vld [vmem:[%s1 + $0x1fc] sm:$0xf]
        %v1186 = vld [vmem:[%s1 + $0x200] sm:$0xf]
        %v1187 = vld [vmem:[%s1 + $0x204] sm:$0xf]
        %v1188 = vld [vmem:[%s1 + $0x208] sm:$0xf]
        %v1189 = vld [vmem:[%s1 + $0x20c] sm:$0xf]
        %v1190 = vld [vmem:[%s1 + $0x210] sm:$0xf]
        %v1191 = vld [vmem:[%s1 + $0x214] sm:$0xf]
        %v1192 = vld [vmem:[%s1 + $0x218] sm:$0xf]
        %v1193 = vld [vmem:[%s1 + $0x21c] sm:$0xf]
        %v1194 = vld [vmem:[%s1 + $0x220] sm:$0xf]
        %v1195 = vld [vmem:[%s1 + $0x224] sm:$0xf]
        %v1196 = vld [vmem:[%s1 + $0x228] sm:$0xf]
        %v1197 = vld [vmem:[%s1 + $0x22c] sm:$0xf]
        %v1198 = vld [vmem:[%s1 + $0x230] sm:$0xf]
        %v1199 = vld [vmem:[%s1 + $0x234] sm:$0xf]
        %v1200 = vld [vmem:[%s1 + $0x238] sm:$0xf]
        %v1201 = vld [vmem:[%s1 + $0x23c] sm:$0xf]
        %v1202 = vld [vmem:[%s2] sm:$0x1]
        %v1204 = vlaneseq
        %v1205 = vshrl.u32 %v1204, 7
        %v1206 = vsub.s32 0, %v1205
        %v1207 = vrot.slane %v1202, %v1206
        %v1353 = vunpack.c.l.b16 %v1058
        %v1354 = vunpack.c.l.b16 %v1059
        %v1355 = vunpack.c.l.b16 %v1060
        %v1356 = vunpack.c.l.b16 %v1061
        %v1357 = vunpack.c.l.b16 %v1062
        %v1358 = vunpack.c.l.b16 %v1063
        %v1359 = vunpack.c.l.b16 %v1064
        %v1360 = vunpack.c.l.b16 %v1065
        %v1361 = vunpack.c.l.b16 %v1066
        %v1362 = vunpack.c.l.b16 %v1067
        %v1363 = vunpack.c.l.b16 %v1068
        %v1364 = vunpack.c.l.b16 %v1069
        %v1365 = vunpack.c.l.b16 %v1070
        %v1366 = vunpack.c.l.b16 %v1071
        %v1367 = vunpack.c.l.b16 %v1072
        %v1368 = vunpack.c.l.b16 %v1073
        %v1369 = vunpack.c.l.b16 %v1074
        %v1370 = vunpack.c.l.b16 %v1075
        %v1371 = vunpack.c.l.b16 %v1076
        %v1372 = vunpack.c.l.b16 %v1077
        %v1373 = vunpack.c.l.b16 %v1078
        %v1374 = vunpack.c.l.b16 %v1079
        %v1375 = vunpack.c.l.b16 %v1080
        %v1376 = vunpack.c.l.b16 %v1081
        %v1377 = vunpack.c.l.b16 %v1082
        %v1378 = vunpack.c.l.b16 %v1083
        %v1379 = vunpack.c.l.b16 %v1084
        %v1380 = vunpack.c.l.b16 %v1085
        %v1381 = vunpack.c.l.b16 %v1086
        %v1382 = vunpack.c.l.b16 %v1087
        %v1383 = vunpack.c.l.b16 %v1088
        %v1384 = vunpack.c.l.b16 %v1089
        %v1385 = vunpack.c.l.b16 %v1090
        %v1386 = vunpack.c.l.b16 %v1091
        %v1387 = vunpack.c.l.b16 %v1092
        %v1388 = vunpack.c.l.b16 %v1093
        %v1389 = vunpack.c.l.b16 %v1094
        %v1390 = vunpack.c.l.b16 %v1095
        %v1391 = vunpack.c.l.b16 %v1096
        %v1392 = vunpack.c.l.b16 %v1097
        %v1393 = vunpack.c.l.b16 %v1098
        %v1394 = vunpack.c.l.b16 %v1099
        %v1395 = vunpack.c.l.b16 %v1100
        %v1396 = vunpack.c.l.b16 %v1101
        %v1397 = vunpack.c.l.b16 %v1102
        %v1398 = vunpack.c.l.b16 %v1103
        %v1399 = vunpack.c.l.b16 %v1104
        %v1400 = vunpack.c.l.b16 %v1105
        %v1401 = vunpack.c.l.b16 %v1106
        %v1402 = vunpack.c.l.b16 %v1107
        %v1403 = vunpack.c.l.b16 %v1108
        %v1404 = vunpack.c.l.b16 %v1109
        %v1405 = vunpack.c.l.b16 %v1110
        %v1406 = vunpack.c.l.b16 %v1111
        %v1407 = vunpack.c.l.b16 %v1112
        %v1408 = vunpack.c.l.b16 %v1113
        %v1409 = vunpack.c.l.b16 %v1114
        %v1410 = vunpack.c.l.b16 %v1115
        %v1411 = vunpack.c.l.b16 %v1116
        %v1412 = vunpack.c.l.b16 %v1117
        %v1413 = vunpack.c.l.b16 %v1118
        %v1414 = vunpack.c.l.b16 %v1119
        %v1415 = vunpack.c.l.b16 %v1120
        %v1416 = vunpack.c.l.b16 %v1121
        %v1417 = vunpack.c.l.b16 %v1122
        %v1418 = vunpack.c.l.b16 %v1123
        %v1419 = vunpack.c.l.b16 %v1124
        %v1420 = vunpack.c.l.b16 %v1125
        %v1421 = vunpack.c.l.b16 %v1126
        %v1422 = vunpack.c.l.b16 %v1127
        %v1423 = vunpack.c.l.b16 %v1128
        %v1424 = vunpack.c.l.b16 %v1129
        %v1425 = vunpack.c.l.b16 %v1130
        %v1426 = vunpack.c.l.b16 %v1131
        %v1427 = vunpack.c.l.b16 %v1132
        %v1428 = vunpack.c.l.b16 %v1133
        %v1429 = vunpack.c.l.b16 %v1134
        %v1430 = vunpack.c.l.b16 %v1135
        %v1431 = vunpack.c.l.b16 %v1136
        %v1432 = vunpack.c.l.b16 %v1137
        %v1433 = vunpack.c.l.b16 %v1138
        %v1434 = vunpack.c.l.b16 %v1139
        %v1435 = vunpack.c.l.b16 %v1140
        %v1436 = vunpack.c.l.b16 %v1141
        %v1437 = vunpack.c.l.b16 %v1142
        %v1438 = vunpack.c.l.b16 %v1143
        %v1439 = vunpack.c.l.b16 %v1144
        %v1440 = vunpack.c.l.b16 %v1145
        %v1441 = vunpack.c.l.b16 %v1146
        %v1442 = vunpack.c.l.b16 %v1147
        %v1443 = vunpack.c.l.b16 %v1148
        %v1444 = vunpack.c.l.b16 %v1149
        %v1445 = vunpack.c.l.b16 %v1150
        %v1446 = vunpack.c.l.b16 %v1151
        %v1447 = vunpack.c.l.b16 %v1152
        %v1448 = vunpack.c.l.b16 %v1153
        %v1449 = vunpack.c.l.b16 %v1154
        %v1450 = vunpack.c.l.b16 %v1155
        %v1451 = vunpack.c.l.b16 %v1156
        %v1452 = vunpack.c.l.b16 %v1157
        %v1453 = vunpack.c.l.b16 %v1158
        %v1454 = vunpack.c.l.b16 %v1159
        %v1455 = vunpack.c.l.b16 %v1160
        %v1456 = vunpack.c.l.b16 %v1161
        %v1457 = vunpack.c.l.b16 %v1162
        %v1458 = vunpack.c.l.b16 %v1163
        %v1459 = vunpack.c.l.b16 %v1164
        %v1460 = vunpack.c.l.b16 %v1165
        %v1461 = vunpack.c.l.b16 %v1166
        %v1462 = vunpack.c.l.b16 %v1167
        %v1463 = vunpack.c.l.b16 %v1168
        %v1464 = vunpack.c.l.b16 %v1169
        %v1465 = vunpack.c.l.b16 %v1170
        %v1466 = vunpack.c.l.b16 %v1171
        %v1467 = vunpack.c.l.b16 %v1172
        %v1468 = vunpack.c.l.b16 %v1173
        %v1469 = vunpack.c.l.b16 %v1174
        %v1470 = vunpack.c.l.b16 %v1175
        %v1471 = vunpack.c.l.b16 %v1176
        %v1472 = vunpack.c.l.b16 %v1177
        %v1473 = vunpack.c.l.b16 %v1178
        %v1474 = vunpack.c.l.b16 %v1179
        %v1475 = vunpack.c.l.b16 %v1180
        %v1476 = vunpack.c.l.b16 %v1181
        %v1477 = vunpack.c.l.b16 %v1182
        %v1478 = vunpack.c.l.b16 %v1183
        %v1479 = vunpack.c.l.b16 %v1184
        %v1480 = vunpack.c.l.b16 %v1185
        %v1481 = vunpack.c.l.b16 %v1186
        %v1482 = vunpack.c.l.b16 %v1187
        %v1483 = vunpack.c.l.b16 %v1188
        %v1484 = vunpack.c.l.b16 %v1189
        %v1485 = vunpack.c.l.b16 %v1190
        %v1486 = vunpack.c.l.b16 %v1191
        %v1487 = vunpack.c.l.b16 %v1192
        %v1488 = vunpack.c.l.b16 %v1193
        %v1489 = vunpack.c.l.b16 %v1194
        %v1490 = vunpack.c.l.b16 %v1195
        %v1491 = vunpack.c.l.b16 %v1196
        %v1492 = vunpack.c.l.b16 %v1197
        %v1493 = vunpack.c.l.b16 %v1198
        %v1494 = vunpack.c.l.b16 %v1199
        %v1495 = vunpack.c.l.b16 %v1200
        %v1496 = vunpack.c.l.b16 %v1201
        %v1497 = vpack.c.b16 %v1354, %v1353
        %v1498 = vpack.c.b16 %v1356, %v1355
        %v1499 = vpack.c.b16 %v1358, %v1357
        %v1500 = vpack.c.b16 %v1360, %v1359
        %v1501 = vpack.c.b16 %v1362, %v1361
        %v1502 = vpack.c.b16 %v1364, %v1363
        %v1503 = vpack.c.b16 %v1366, %v1365
        %v1504 = vpack.c.b16 %v1368, %v1367
        %v1505 = vpack.c.b16 %v1370, %v1369
        %v1506 = vpack.c.b16 %v1372, %v1371
        %v1507 = vpack.c.b16 %v1374, %v1373
        %v1508 = vpack.c.b16 %v1376, %v1375
        %v1509 = vpack.c.b16 %v1378, %v1377
        %v1510 = vpack.c.b16 %v1380, %v1379
        %v1511 = vpack.c.b16 %v1382, %v1381
        %v1512 = vpack.c.b16 %v1384, %v1383
        %v1513 = vpack.c.b16 %v1386, %v1385
        %v1514 = vpack.c.b16 %v1388, %v1387
        %v1515 = vpack.c.b16 %v1390, %v1389
        %v1516 = vpack.c.b16 %v1392, %v1391
        %v1517 = vpack.c.b16 %v1394, %v1393
        %v1518 = vpack.c.b16 %v1396, %v1395
        %v1519 = vpack.c.b16 %v1398, %v1397
        %v1520 = vpack.c.b16 %v1400, %v1399
        %v1521 = vpack.c.b16 %v1402, %v1401
        %v1522 = vpack.c.b16 %v1404, %v1403
        %v1523 = vpack.c.b16 %v1406, %v1405
        %v1524 = vpack.c.b16 %v1408, %v1407
        %v1525 = vpack.c.b16 %v1410, %v1409
        %v1526 = vpack.c.b16 %v1412, %v1411
        %v1527 = vpack.c.b16 %v1414, %v1413
        %v1528 = vpack.c.b16 %v1416, %v1415
        %v1529 = vpack.c.b16 %v1418, %v1417
        %v1530 = vpack.c.b16 %v1420, %v1419
        %v1531 = vpack.c.b16 %v1422, %v1421
        %v1532 = vpack.c.b16 %v1424, %v1423
        %v1533 = vpack.c.b16 %v1426, %v1425
        %v1534 = vpack.c.b16 %v1428, %v1427
        %v1535 = vpack.c.b16 %v1430, %v1429
        %v1536 = vpack.c.b16 %v1432, %v1431
        %v1537 = vpack.c.b16 %v1434, %v1433
        %v1538 = vpack.c.b16 %v1436, %v1435
        %v1539 = vpack.c.b16 %v1438, %v1437
        %v1540 = vpack.c.b16 %v1440, %v1439
        %v1541 = vpack.c.b16 %v1442, %v1441
        %v1542 = vpack.c.b16 %v1444, %v1443
        %v1543 = vpack.c.b16 %v1446, %v1445
        %v1544 = vpack.c.b16 %v1448, %v1447
        %v1545 = vpack.c.b16 %v1450, %v1449
        %v1546 = vpack.c.b16 %v1452, %v1451
        %v1547 = vpack.c.b16 %v1454, %v1453
        %v1548 = vpack.c.b16 %v1456, %v1455
        %v1549 = vpack.c.b16 %v1458, %v1457
        %v1550 = vpack.c.b16 %v1460, %v1459
        %v1551 = vpack.c.b16 %v1462, %v1461
        %v1552 = vpack.c.b16 %v1464, %v1463
        %v1553 = vpack.c.b16 %v1466, %v1465
        %v1554 = vpack.c.b16 %v1468, %v1467
        %v1555 = vpack.c.b16 %v1470, %v1469
        %v1556 = vpack.c.b16 %v1472, %v1471
        %v1557 = vpack.c.b16 %v1474, %v1473
        %v1558 = vpack.c.b16 %v1476, %v1475
        %v1559 = vpack.c.b16 %v1478, %v1477
        %v1560 = vpack.c.b16 %v1480, %v1479
        %v1561 = vpack.c.b16 %v1482, %v1481
        %v1562 = vpack.c.b16 %v1484, %v1483
        %v1563 = vpack.c.b16 %v1486, %v1485
        %v1564 = vpack.c.b16 %v1488, %v1487
        %v1565 = vpack.c.b16 %v1490, %v1489
        %v1566 = vpack.c.b16 %v1492, %v1491
        %v1567 = vpack.c.b16 %v1494, %v1493
        %v1568 = vpack.c.b16 %v1496, %v1495
        %1641 = vmatprep.subr.bf16.mxu0 0
        %1642 = vmatpush1.bf16.msra.mxu0 %v1504
        %1643 = vmatprep.subr.bf16.mxu0 0
        %1644 = vmatpush1.bf16.msra.mxu0 %v1503
        %1645 = vmatprep.subr.bf16.mxu0 0
        %1646 = vmatpush1.bf16.msra.mxu0 %v1502
        %1647 = vmatprep.subr.bf16.mxu0 0
        %1648 = vmatpush1.bf16.msra.mxu0 %v1501
        %1649 = vmatprep.subr.bf16.mxu0 0
        %1650 = vmatpush1.bf16.msra.mxu0 %v1500
        %1651 = vmatprep.subr.bf16.mxu0 0
        %1652 = vmatpush1.bf16.msra.mxu0 %v1499
        %1653 = vmatprep.subr.bf16.mxu0 0
        %1654 = vmatpush1.bf16.msra.mxu0 %v1498
        %1655 = vmatprep.subr.bf16.mxu0 0
        %1656 = vmatpush1.bf16.msra.mxu0 %v1497
        %1657 = vmatprep.subr.bf16.mxu0 0
        %1658 = vmatpush2.bf16.msra.mxu0 %v1512
        %1659 = vmatprep.subr.bf16.mxu0 0
        %1660 = vmatpush2.bf16.msra.mxu0 %v1511
        %1661 = vmatprep.subr.bf16.mxu0 0
        %1662 = vmatpush2.bf16.msra.mxu0 %v1510
        %1663 = vmatprep.subr.bf16.mxu0 0
        %1664 = vmatpush2.bf16.msra.mxu0 %v1509
        %1665 = vmatprep.subr.bf16.mxu0 0
        %1666 = vmatpush2.bf16.msra.mxu0 %v1508
        %1667 = vmatprep.subr.bf16.mxu0 0
        %1668 = vmatpush2.bf16.msra.mxu0 %v1507
        %1669 = vmatprep.subr.bf16.mxu0 0
        %1670 = vmatpush2.bf16.msra.mxu0 %v1506
        %1671 = vmatprep.subr.bf16.mxu0 0
        %1672 = vmatpush2.bf16.msra.mxu0 %v1505
        %1673 = vmatprep.mubr.bf16.mxu0 %v938
        %1674 = vmatmul.mubr.bf16.gmra.mxu0 %v874
        %v1675 = vpop.f32.mrf.mxu0
        %v1676 = vadd.f32 %v1207, %v1675
        %v1677 = vpop.f32.mrf.mxu0
        %v1678 = vpop.f32.mrf.mxu0
        %v1679 = vadd.f32 %v1207, %v1678
        %v1680 = vpop.f32.mrf.mxu0
        %1681 = vmatprep.mubr.bf16.mxu0 %v939
        %1682 = vmatmul.mubr.bf16.gmra.mxu0 %v875
        %v1683 = vpop.f32.mrf.mxu0
        %v1684 = vadd.f32 %v1207, %v1683
        %v1685 = vpop.f32.mrf.mxu0
        %v1686 = vpop.f32.mrf.mxu0
        %v1687 = vadd.f32 %v1207, %v1686
        %v1688 = vpop.f32.mrf.mxu0
        %1689 = vmatprep.mubr.bf16.mxu0 %v940
        %1690 = vmatmul.mubr.bf16.gmra.mxu0 %v876
        %v1691 = vpop.f32.mrf.mxu0
        %v1692 = vadd.f32 %v1207, %v1691
        %v1693 = vpop.f32.mrf.mxu0
        %v1694 = vpop.f32.mrf.mxu0
        %v1695 = vadd.f32 %v1207, %v1694
        %v1696 = vpop.f32.mrf.mxu0
        %1697 = vmatprep.mubr.bf16.mxu0 %v941
        %1698 = vmatmul.mubr.bf16.gmra.mxu0 %v877
        %v1699 = vpop.f32.mrf.mxu0
        %v1700 = vadd.f32 %v1207, %v1699
        %v1701 = vpop.f32.mrf.mxu0
        %v1702 = vpop.f32.mrf.mxu0
        %v1703 = vadd.f32 %v1207, %v1702
        %v1704 = vpop.f32.mrf.mxu0
        %1705 = vmatprep.mubr.bf16.mxu0 %v942
        %1706 = vmatmul.mubr.bf16.gmra.mxu0 %v878
        %v1707 = vpop.f32.mrf.mxu0
        %v1708 = vadd.f32 %v1207, %v1707
        %v1709 = vpop.f32.mrf.mxu0
        %v1710 = vpop.f32.mrf.mxu0
        %v1711 = vadd.f32 %v1207, %v1710
        %v1712 = vpop.f32.mrf.mxu0
        %1713 = vmatprep.mubr.bf16.mxu0 %v943
        %1714 = vmatmul.mubr.bf16.gmra.mxu0 %v879
        %v1715 = vpop.f32.mrf.mxu0
        %v1716 = vadd.f32 %v1207, %v1715
        %v1717 = vpop.f32.mrf.mxu0
        %v1718 = vpop.f32.mrf.mxu0
        %v1719 = vadd.f32 %v1207, %v1718
        %v1720 = vpop.f32.mrf.mxu0
        %1721 = vmatprep.mubr.bf16.mxu0 %v944
        %1722 = vmatmul.mubr.bf16.gmra.mxu0 %v880
        %v1723 = vpop.f32.mrf.mxu0
        %v1724 = vadd.f32 %v1207, %v1723
        %v1725 = vpop.f32.mrf.mxu0
        %v1726 = vpop.f32.mrf.mxu0
        %v1727 = vadd.f32 %v1207, %v1726
        %v1728 = vpop.f32.mrf.mxu0
        %1729 = vmatprep.mubr.bf16.mxu0 %v945
        %1730 = vmatmul.mubr.bf16.gmra.mxu0 %v881
        %v1731 = vpop.f32.mrf.mxu0
        %v1732 = vadd.f32 %v1207, %v1731
        %v1733 = vpop.f32.mrf.mxu0
        %v1734 = vpop.f32.mrf.mxu0
        %v1735 = vadd.f32 %v1207, %v1734
        %v1736 = vpop.f32.mrf.mxu0
        %1737 = vmatprep.mubr.bf16.mxu0 %v946
        %1738 = vmatmul.mubr.bf16.gmra.mxu0 %v882
        %v1739 = vpop.f32.mrf.mxu0
        %v1740 = vadd.f32 %v1207, %v1739
        %v1741 = vpop.f32.mrf.mxu0
        %v1742 = vpop.f32.mrf.mxu0
        %v1743 = vadd.f32 %v1207, %v1742
        %v1744 = vpop.f32.mrf.mxu0
        %1745 = vmatprep.mubr.bf16.mxu0 %v947
        %1746 = vmatmul.mubr.bf16.gmra.mxu0 %v883
        %v1747 = vpop.f32.mrf.mxu0
        %v1748 = vadd.f32 %v1207, %v1747
        %v1749 = vpop.f32.mrf.mxu0
        %v1750 = vpop.f32.mrf.mxu0
        %v1751 = vadd.f32 %v1207, %v1750
        %v1752 = vpop.f32.mrf.mxu0
        %1753 = vmatprep.mubr.bf16.mxu0 %v948
        %1754 = vmatmul.mubr.bf16.gmra.mxu0 %v884
        %v1755 = vpop.f32.mrf.mxu0
        %v1756 = vadd.f32 %v1207, %v1755
        %v1757 = vpop.f32.mrf.mxu0
        %v1758 = vpop.f32.mrf.mxu0
        %v1759 = vadd.f32 %v1207, %v1758
        %v1760 = vpop.f32.mrf.mxu0
        %1761 = vmatprep.mubr.bf16.mxu0 %v949
        %1762 = vmatmul.mubr.bf16.gmra.mxu0 %v885
        %v1763 = vpop.f32.mrf.mxu0
        %v1764 = vadd.f32 %v1207, %v1763
        %v1765 = vpop.f32.mrf.mxu0
        %v1766 = vpop.f32.mrf.mxu0
        %v1767 = vadd.f32 %v1207, %v1766
        %v1768 = vpop.f32.mrf.mxu0
        %1769 = vmatprep.mubr.bf16.mxu0 %v950
        %1770 = vmatmul.mubr.bf16.gmra.mxu0 %v886
        %v1771 = vpop.f32.mrf.mxu0
        %v1772 = vadd.f32 %v1207, %v1771
        %v1773 = vpop.f32.mrf.mxu0
        %v1774 = vpop.f32.mrf.mxu0
        %v1775 = vadd.f32 %v1207, %v1774
        %v1776 = vpop.f32.mrf.mxu0
        %1777 = vmatprep.mubr.bf16.mxu0 %v951
        %1778 = vmatmul.mubr.bf16.gmra.mxu0 %v887
        %v1779 = vpop.f32.mrf.mxu0
        %v1780 = vadd.f32 %v1207, %v1779
        %v1781 = vpop.f32.mrf.mxu0
        %v1782 = vpop.f32.mrf.mxu0
        %v1783 = vadd.f32 %v1207, %v1782
        %v1784 = vpop.f32.mrf.mxu0
        %1785 = vmatprep.mubr.bf16.mxu0 %v952
        %1786 = vmatmul.mubr.bf16.gmra.mxu0 %v888
        %v1787 = vpop.f32.mrf.mxu0
        %v1788 = vadd.f32 %v1207, %v1787
        %v1789 = vpop.f32.mrf.mxu0
        %v1790 = vpop.f32.mrf.mxu0
        %v1791 = vadd.f32 %v1207, %v1790
        %v1792 = vpop.f32.mrf.mxu0
        %1793 = vmatprep.mubr.bf16.mxu0 %v953
        %1794 = vmatmul.mubr.bf16.gmra.mxu0 %v889
        %v1795 = vpop.f32.mrf.mxu0
        %v1796 = vadd.f32 %v1207, %v1795
        %v1797 = vpop.f32.mrf.mxu0
        %v1798 = vpop.f32.mrf.mxu0
        %v1799 = vadd.f32 %v1207, %v1798
        %v1800 = vpop.f32.mrf.mxu0
        %1801 = vdwg.mxu0
        %1802 = vmatprep.subr.bf16.mxu0 0
        %1803 = vmatpush1.bf16.msra.mxu0 %v1520
        %1804 = vmatprep.subr.bf16.mxu0 0
        %1805 = vmatpush1.bf16.msra.mxu0 %v1519
        %1806 = vmatprep.subr.bf16.mxu0 0
        %1807 = vmatpush1.bf16.msra.mxu0 %v1518
        %1808 = vmatprep.subr.bf16.mxu0 0
        %1809 = vmatpush1.bf16.msra.mxu0 %v1517
        %1810 = vmatprep.subr.bf16.mxu0 0
        %1811 = vmatpush1.bf16.msra.mxu0 %v1516
        %1812 = vmatprep.subr.bf16.mxu0 0
        %1813 = vmatpush1.bf16.msra.mxu0 %v1515
        %1814 = vmatprep.subr.bf16.mxu0 0
        %1815 = vmatpush1.bf16.msra.mxu0 %v1514
        %1816 = vmatprep.subr.bf16.mxu0 0
        %1817 = vmatpush1.bf16.msra.mxu0 %v1513
        %1818 = vmatprep.subr.bf16.mxu0 0
        %1819 = vmatpush2.bf16.msra.mxu0 %v1528
        %1820 = vmatprep.subr.bf16.mxu0 0
        %1821 = vmatpush2.bf16.msra.mxu0 %v1527
        %1822 = vmatprep.subr.bf16.mxu0 0
        %1823 = vmatpush2.bf16.msra.mxu0 %v1526
        %1824 = vmatprep.subr.bf16.mxu0 0
        %1825 = vmatpush2.bf16.msra.mxu0 %v1525
        %1826 = vmatprep.subr.bf16.mxu0 0
        %1827 = vmatpush2.bf16.msra.mxu0 %v1524
        %1828 = vmatprep.subr.bf16.mxu0 0
        %1829 = vmatpush2.bf16.msra.mxu0 %v1523
        %1830 = vmatprep.subr.bf16.mxu0 0
        %1831 = vmatpush2.bf16.msra.mxu0 %v1522
        %1832 = vmatprep.subr.bf16.mxu0 0
        %1833 = vmatpush2.bf16.msra.mxu0 %v1521
        %1834 = vmatprep.mubr.bf16.mxu0 %v875
        %1835 = vmatmul.mubr.bf16.gmra.mxu0 %v1002
        %v1836 = vpop.f32.mrf.mxu0
        %v1837 = vadd.f32 %v1676, %v1836
        %v1838 = vpop.f32.mrf.mxu0
        %v1839 = vpop.f32.mrf.mxu0
        %v1840 = vadd.f32 %v1679, %v1839
        %v1841 = vpop.f32.mrf.mxu0
        %1842 = vmatprep.mubr.bf16.mxu0 %v876
        %1843 = vmatmul.mubr.bf16.gmra.mxu0 %v1003
        %v1844 = vpop.f32.mrf.mxu0
        %v1845 = vadd.f32 %v1684, %v1844
        %v1846 = vpop.f32.mrf.mxu0
        %v1847 = vpop.f32.mrf.mxu0
        %v1848 = vadd.f32 %v1687, %v1847
        %v1849 = vpop.f32.mrf.mxu0
        %1850 = vmatprep.mubr.bf16.mxu0 %v877
        %1851 = vmatmul.mubr.bf16.gmra.mxu0 %v1004
        %v1852 = vpop.f32.mrf.mxu0
        %v1853 = vadd.f32 %v1692, %v1852
        %v1854 = vpop.f32.mrf.mxu0
        %v1855 = vpop.f32.mrf.mxu0
        %v1856 = vadd.f32 %v1695, %v1855
        %v1857 = vpop.f32.mrf.mxu0
        %1858 = vmatprep.mubr.bf16.mxu0 %v878
        %1859 = vmatmul.mubr.bf16.gmra.mxu0 %v1005
        %v1860 = vpop.f32.mrf.mxu0
        %v1861 = vadd.f32 %v1700, %v1860
        %v1862 = vpop.f32.mrf.mxu0
        %v1863 = vpop.f32.mrf.mxu0
        %v1864 = vadd.f32 %v1703, %v1863
        %v1865 = vpop.f32.mrf.mxu0
        %1866 = vmatprep.mubr.bf16.mxu0 %v879
        %1867 = vmatmul.mubr.bf16.gmra.mxu0 %v1006
        %v1868 = vpop.f32.mrf.mxu0
        %v1869 = vadd.f32 %v1708, %v1868
        %v1870 = vpop.f32.mrf.mxu0
        %v1871 = vpop.f32.mrf.mxu0
        %v1872 = vadd.f32 %v1711, %v1871
        %v1873 = vpop.f32.mrf.mxu0
        %1874 = vmatprep.mubr.bf16.mxu0 %v880
        %1875 = vmatmul.mubr.bf16.gmra.mxu0 %v1007
        %v1876 = vpop.f32.mrf.mxu0
        %v1877 = vadd.f32 %v1716, %v1876
        %v1878 = vpop.f32.mrf.mxu0
        %v1879 = vpop.f32.mrf.mxu0
        %v1880 = vadd.f32 %v1719, %v1879
        %v1881 = vpop.f32.mrf.mxu0
        %1882 = vmatprep.mubr.bf16.mxu0 %v881
        %1883 = vmatmul.mubr.bf16.gmra.mxu0 %v1008
        %v1884 = vpop.f32.mrf.mxu0
        %v1885 = vadd.f32 %v1724, %v1884
        %v1886 = vpop.f32.mrf.mxu0
        %v1887 = vpop.f32.mrf.mxu0
        %v1888 = vadd.f32 %v1727, %v1887
        %v1889 = vpop.f32.mrf.mxu0
        %1890 = vmatprep.mubr.bf16.mxu0 %v882
        %1891 = vmatmul.mubr.bf16.gmra.mxu0 %v1009
        %v1892 = vpop.f32.mrf.mxu0
        %v1893 = vadd.f32 %v1732, %v1892
        %v1894 = vpop.f32.mrf.mxu0
        %v1895 = vpop.f32.mrf.mxu0
        %v1896 = vadd.f32 %v1735, %v1895
        %v1897 = vpop.f32.mrf.mxu0
        %1898 = vmatprep.mubr.bf16.mxu0 %v883
        %1899 = vmatmul.mubr.bf16.gmra.mxu0 %v1010
        %v1900 = vpop.f32.mrf.mxu0
        %v1901 = vadd.f32 %v1740, %v1900
        %v1902 = vpop.f32.mrf.mxu0
        %v1903 = vpop.f32.mrf.mxu0
        %v1904 = vadd.f32 %v1743, %v1903
        %v1905 = vpop.f32.mrf.mxu0
        %1906 = vmatprep.mubr.bf16.mxu0 %v884
        %1907 = vmatmul.mubr.bf16.gmra.mxu0 %v1011
        %v1908 = vpop.f32.mrf.mxu0
        %v1909 = vadd.f32 %v1748, %v1908
        %v1910 = vpop.f32.mrf.mxu0
        %v1911 = vpop.f32.mrf.mxu0
        %v1912 = vadd.f32 %v1751, %v1911
        %v1913 = vpop.f32.mrf.mxu0
        %1914 = vmatprep.mubr.bf16.mxu0 %v885
        %1915 = vmatmul.mubr.bf16.gmra.mxu0 %v1012
        %v1916 = vpop.f32.mrf.mxu0
        %v1917 = vadd.f32 %v1756, %v1916
        %v1918 = vpop.f32.mrf.mxu0
        %v1919 = vpop.f32.mrf.mxu0
        %v1920 = vadd.f32 %v1759, %v1919
        %v1921 = vpop.f32.mrf.mxu0
        %1922 = vmatprep.mubr.bf16.mxu0 %v886
        %1923 = vmatmul.mubr.bf16.gmra.mxu0 %v1013
        %v1924 = vpop.f32.mrf.mxu0
        %v1925 = vadd.f32 %v1764, %v1924
        %v1926 = vpop.f32.mrf.mxu0
        %v1927 = vpop.f32.mrf.mxu0
        %v1928 = vadd.f32 %v1767, %v1927
        %v1929 = vpop.f32.mrf.mxu0
        %1930 = vmatprep.mubr.bf16.mxu0 %v887
        %1931 = vmatmul.mubr.bf16.gmra.mxu0 %v1014
        %v1932 = vpop.f32.mrf.mxu0
        %v1933 = vadd.f32 %v1772, %v1932
        %v1934 = vpop.f32.mrf.mxu0
        %v1935 = vpop.f32.mrf.mxu0
        %v1936 = vadd.f32 %v1775, %v1935
        %v1937 = vpop.f32.mrf.mxu0
        %1938 = vmatprep.mubr.bf16.mxu0 %v888
        %1939 = vmatmul.mubr.bf16.gmra.mxu0 %v1015
        %v1940 = vpop.f32.mrf.mxu0
        %v1941 = vadd.f32 %v1780, %v1940
        %v1942 = vpop.f32.mrf.mxu0
        %v1943 = vpop.f32.mrf.mxu0
        %v1944 = vadd.f32 %v1783, %v1943
        %v1945 = vpop.f32.mrf.mxu0
        %1946 = vmatprep.mubr.bf16.mxu0 %v889
        %1947 = vmatmul.mubr.bf16.gmra.mxu0 %v1016
        %v1948 = vpop.f32.mrf.mxu0
        %v1949 = vadd.f32 %v1788, %v1948
        %v1950 = vpop.f32.mrf.mxu0
        %v1951 = vpop.f32.mrf.mxu0
        %v1952 = vadd.f32 %v1791, %v1951
        %v1953 = vpop.f32.mrf.mxu0
        %1954 = vmatprep.mubr.bf16.mxu0 %v1036
        %1955 = vmatmul.mubr.bf16.gmra.mxu0 %v1017
        %v1956 = vpop.f32.mrf.mxu0
        %v1957 = vadd.f32 %v1796, %v1956
        %v1958 = vpop.f32.mrf.mxu0
        %v1959 = vpop.f32.mrf.mxu0
        %v1960 = vadd.f32 %v1799, %v1959
        %v1961 = vpop.f32.mrf.mxu0
        %1962 = vdwg.mxu0
        %1963 = vmatprep.subr.bf16.mxu0 0
        %1964 = vmatpush1.bf16.msra.mxu0 %v1536
        %1965 = vmatprep.subr.bf16.mxu0 0
        %1966 = vmatpush1.bf16.msra.mxu0 %v1535
        %1967 = vmatprep.subr.bf16.mxu0 0
        %1968 = vmatpush1.bf16.msra.mxu0 %v1534
        %1969 = vmatprep.subr.bf16.mxu0 0
        %1970 = vmatpush1.bf16.msra.mxu0 %v1533
        %1971 = vmatprep.subr.bf16.mxu0 0
        %1972 = vmatpush1.bf16.msra.mxu0 %v1532
        %1973 = vmatprep.subr.bf16.mxu0 0
        %1974 = vmatpush1.bf16.msra.mxu0 %v1531
        %1975 = vmatprep.subr.bf16.mxu0 0
        %1976 = vmatpush1.bf16.msra.mxu0 %v1530
        %1977 = vmatprep.subr.bf16.mxu0 0
        %1978 = vmatpush1.bf16.msra.mxu0 %v1529
        %1979 = vmatprep.subr.bf16.mxu0 0
        %1980 = vmatpush2.bf16.msra.mxu0 %v1544
        %1981 = vmatprep.subr.bf16.mxu0 0
        %1982 = vmatpush2.bf16.msra.mxu0 %v1543
        %1983 = vmatprep.subr.bf16.mxu0 0
        %1984 = vmatpush2.bf16.msra.mxu0 %v1542
        %1985 = vmatprep.subr.bf16.mxu0 0
        %1986 = vmatpush2.bf16.msra.mxu0 %v1541
        %1987 = vmatprep.subr.bf16.mxu0 0
        %1988 = vmatpush2.bf16.msra.mxu0 %v1540
        %1989 = vmatprep.subr.bf16.mxu0 0
        %1990 = vmatpush2.bf16.msra.mxu0 %v1539
        %1991 = vmatprep.subr.bf16.mxu0 0
        %1992 = vmatpush2.bf16.msra.mxu0 %v1538
        %1993 = vmatprep.subr.bf16.mxu0 0
        %1994 = vmatpush2.bf16.msra.mxu0 %v1537
        %1995 = vmatprep.mubr.bf16.mxu0 %v1003
        %1996 = vmatmul.mubr.bf16.gmra.mxu0 %v939
        %v1997 = vpop.f32.mrf.mxu0
        %v1998 = vadd.f32 %v1837, %v1997
        %v1999 = vpop.f32.mrf.mxu0
        %v2000 = vpop.f32.mrf.mxu0
        %v2001 = vadd.f32 %v1840, %v2000
        %v2002 = vpop.f32.mrf.mxu0
        %2003 = vmatprep.mubr.bf16.mxu0 %v1004
        %2004 = vmatmul.mubr.bf16.gmra.mxu0 %v940
        %v2005 = vpop.f32.mrf.mxu0
        %v2006 = vadd.f32 %v1845, %v2005
        %v2007 = vpop.f32.mrf.mxu0
        %v2008 = vpop.f32.mrf.mxu0
        %v2009 = vadd.f32 %v1848, %v2008
        %v2010 = vpop.f32.mrf.mxu0
        %2011 = vmatprep.mubr.bf16.mxu0 %v1005
        %2012 = vmatmul.mubr.bf16.gmra.mxu0 %v941
        %v2013 = vpop.f32.mrf.mxu0
        %v2014 = vadd.f32 %v1853, %v2013
        %v2015 = vpop.f32.mrf.mxu0
        %v2016 = vpop.f32.mrf.mxu0
        %v2017 = vadd.f32 %v1856, %v2016
        %v2018 = vpop.f32.mrf.mxu0
        %2019 = vmatprep.mubr.bf16.mxu0 %v1006
        %2020 = vmatmul.mubr.bf16.gmra.mxu0 %v942
        %v2021 = vpop.f32.mrf.mxu0
        %v2022 = vadd.f32 %v1861, %v2021
        %v2023 = vpop.f32.mrf.mxu0
        %v2024 = vpop.f32.mrf.mxu0
        %v2025 = vadd.f32 %v1864, %v2024
        %v2026 = vpop.f32.mrf.mxu0
        %2027 = vmatprep.mubr.bf16.mxu0 %v1007
        %2028 = vmatmul.mubr.bf16.gmra.mxu0 %v943
        %v2029 = vpop.f32.mrf.mxu0
        %v2030 = vadd.f32 %v1869, %v2029
        %v2031 = vpop.f32.mrf.mxu0
        %v2032 = vpop.f32.mrf.mxu0
        %v2033 = vadd.f32 %v1872, %v2032
        %v2034 = vpop.f32.mrf.mxu0
        %2035 = vmatprep.mubr.bf16.mxu0 %v1008
        %2036 = vmatmul.mubr.bf16.gmra.mxu0 %v944
        %v2037 = vpop.f32.mrf.mxu0
        %v2038 = vadd.f32 %v1877, %v2037
        %v2039 = vpop.f32.mrf.mxu0
        %v2040 = vpop.f32.mrf.mxu0
        %v2041 = vadd.f32 %v1880, %v2040
        %v2042 = vpop.f32.mrf.mxu0
        %2043 = vmatprep.mubr.bf16.mxu0 %v1009
        %2044 = vmatmul.mubr.bf16.gmra.mxu0 %v945
        %v2045 = vpop.f32.mrf.mxu0
        %v2046 = vadd.f32 %v1885, %v2045
        %v2047 = vpop.f32.mrf.mxu0
        %v2048 = vpop.f32.mrf.mxu0
        %v2049 = vadd.f32 %v1888, %v2048
        %v2050 = vpop.f32.mrf.mxu0
        %2051 = vmatprep.mubr.bf16.mxu0 %v1010
        %2052 = vmatmul.mubr.bf16.gmra.mxu0 %v946
        %v2053 = vpop.f32.mrf.mxu0
        %v2054 = vadd.f32 %v1893, %v2053
        %v2055 = vpop.f32.mrf.mxu0
        %v2056 = vpop.f32.mrf.mxu0
        %v2057 = vadd.f32 %v1896, %v2056
        %v2058 = vpop.f32.mrf.mxu0
        %2059 = vmatprep.mubr.bf16.mxu0 %v1011
        %2060 = vmatmul.mubr.bf16.gmra.mxu0 %v947
        %v2061 = vpop.f32.mrf.mxu0
        %v2062 = vadd.f32 %v1901, %v2061
        %v2063 = vpop.f32.mrf.mxu0
        %v2064 = vpop.f32.mrf.mxu0
        %v2065 = vadd.f32 %v1904, %v2064
        %v2066 = vpop.f32.mrf.mxu0
        %2067 = vmatprep.mubr.bf16.mxu0 %v1012
        %2068 = vmatmul.mubr.bf16.gmra.mxu0 %v948
        %v2069 = vpop.f32.mrf.mxu0
        %v2070 = vadd.f32 %v1909, %v2069
        %v2071 = vpop.f32.mrf.mxu0
        %v2072 = vpop.f32.mrf.mxu0
        %v2073 = vadd.f32 %v1912, %v2072
        %v2074 = vpop.f32.mrf.mxu0
        %2075 = vmatprep.mubr.bf16.mxu0 %v1013
        %2076 = vmatmul.mubr.bf16.gmra.mxu0 %v949
        %v2077 = vpop.f32.mrf.mxu0
        %v2078 = vadd.f32 %v1917, %v2077
        %v2079 = vpop.f32.mrf.mxu0
        %v2080 = vpop.f32.mrf.mxu0
        %v2081 = vadd.f32 %v1920, %v2080
        %v2082 = vpop.f32.mrf.mxu0
        %2083 = vmatprep.mubr.bf16.mxu0 %v1014
        %2084 = vmatmul.mubr.bf16.gmra.mxu0 %v950
        %v2085 = vpop.f32.mrf.mxu0
        %v2086 = vadd.f32 %v1925, %v2085
        %v2087 = vpop.f32.mrf.mxu0
        %v2088 = vpop.f32.mrf.mxu0
        %v2089 = vadd.f32 %v1928, %v2088
        %v2090 = vpop.f32.mrf.mxu0
        %2091 = vmatprep.mubr.bf16.mxu0 %v1015
        %2092 = vmatmul.mubr.bf16.gmra.mxu0 %v951
        %v2093 = vpop.f32.mrf.mxu0
        %v2094 = vadd.f32 %v1933, %v2093
        %v2095 = vpop.f32.mrf.mxu0
        %v2096 = vpop.f32.mrf.mxu0
        %v2097 = vadd.f32 %v1936, %v2096
        %v2098 = vpop.f32.mrf.mxu0
        %2099 = vmatprep.mubr.bf16.mxu0 %v1016
        %2100 = vmatmul.mubr.bf16.gmra.mxu0 %v952
        %v2101 = vpop.f32.mrf.mxu0
        %v2102 = vadd.f32 %v1941, %v2101
        %v2103 = vpop.f32.mrf.mxu0
        %v2104 = vpop.f32.mrf.mxu0
        %v2105 = vadd.f32 %v1944, %v2104
        %v2106 = vpop.f32.mrf.mxu0
        %2107 = vmatprep.mubr.bf16.mxu0 %v1017
        %2108 = vmatmul.mubr.bf16.gmra.mxu0 %v953
        %v2109 = vpop.f32.mrf.mxu0
        %v2110 = vadd.f32 %v1949, %v2109
        %v2111 = vpop.f32.mrf.mxu0
        %v2112 = vpop.f32.mrf.mxu0
        %v2113 = vadd.f32 %v1952, %v2112
        %v2114 = vpop.f32.mrf.mxu0
        %2115 = vmatprep.mubr.bf16.mxu0 %v1044
        %2116 = vmatmul.mubr.bf16.gmra.mxu0 %v1040
        %v2117 = vpop.f32.mrf.mxu0
        %v2118 = vadd.f32 %v1957, %v2117
        %v2119 = vpop.f32.mrf.mxu0
        %v2120 = vpop.f32.mrf.mxu0
        %v2121 = vadd.f32 %v1960, %v2120
        %v2122 = vpop.f32.mrf.mxu0
        %2123 = vdwg.mxu0
        %2124 = vmatprep.subr.bf16.mxu0 0
        %2125 = vmatpush1.bf16.msra.mxu0 %v1552
        %2126 = vmatprep.subr.bf16.mxu0 0
        %2127 = vmatpush1.bf16.msra.mxu0 %v1551
        %2128 = vmatprep.subr.bf16.mxu0 0
        %2129 = vmatpush1.bf16.msra.mxu0 %v1550
        %2130 = vmatprep.subr.bf16.mxu0 0
        %2131 = vmatpush1.bf16.msra.mxu0 %v1549
        %2132 = vmatprep.subr.bf16.mxu0 0
        %2133 = vmatpush1.bf16.msra.mxu0 %v1548
        %2134 = vmatprep.subr.bf16.mxu0 0
        %2135 = vmatpush1.bf16.msra.mxu0 %v1547
        %2136 = vmatprep.subr.bf16.mxu0 0
        %2137 = vmatpush1.bf16.msra.mxu0 %v1546
        %2138 = vmatprep.subr.bf16.mxu0 0
        %2139 = vmatpush1.bf16.msra.mxu0 %v1545
        %2140 = vmatprep.subr.bf16.mxu0 0
        %2141 = vmatpush2.bf16.msra.mxu0 %v1560
        %2142 = vmatprep.subr.bf16.mxu0 0
        %2143 = vmatpush2.bf16.msra.mxu0 %v1559
        %2144 = vmatprep.subr.bf16.mxu0 0
        %2145 = vmatpush2.bf16.msra.mxu0 %v1558
        %2146 = vmatprep.subr.bf16.mxu0 0
        %2147 = vmatpush2.bf16.msra.mxu0 %v1557
        %2148 = vmatprep.subr.bf16.mxu0 0
        %2149 = vmatpush2.bf16.msra.mxu0 %v1556
        %2150 = vmatprep.subr.bf16.mxu0 0
        %2151 = vmatpush2.bf16.msra.mxu0 %v1555
        %2152 = vmatprep.subr.bf16.mxu0 0
        %2153 = vmatpush2.bf16.msra.mxu0 %v1554
        %2154 = vmatprep.subr.bf16.mxu0 0
        %2155 = vmatpush2.bf16.msra.mxu0 %v1553
        %2156 = vmatprep.mubr.bf16.mxu0 %v940
        %2157 = vmatmul.mubr.bf16.gmra.mxu0 %v876
        %v2158 = vpop.f32.mrf.mxu0
        %v2159 = vadd.f32 %v1998, %v2158
        %v2160 = vpop.f32.mrf.mxu0
        %v2161 = vpop.f32.mrf.mxu0
        %v2162 = vadd.f32 %v2001, %v2161
        %v2163 = vpop.f32.mrf.mxu0
        %2164 = vmatprep.mubr.bf16.mxu0 %v941
        %2165 = vmatmul.mubr.bf16.gmra.mxu0 %v877
        %v2166 = vpop.f32.mrf.mxu0
        %v2167 = vadd.f32 %v2006, %v2166
        %v2168 = vpop.f32.mrf.mxu0
        %v2169 = vpop.f32.mrf.mxu0
        %v2170 = vadd.f32 %v2009, %v2169
        %v2171 = vpop.f32.mrf.mxu0
        %2172 = vmatprep.mubr.bf16.mxu0 %v942
        %2173 = vmatmul.mubr.bf16.gmra.mxu0 %v878
        %v2174 = vpop.f32.mrf.mxu0
        %v2175 = vadd.f32 %v2014, %v2174
        %v2176 = vpop.f32.mrf.mxu0
        %v2177 = vpop.f32.mrf.mxu0
        %v2178 = vadd.f32 %v2017, %v2177
        %v2179 = vpop.f32.mrf.mxu0
        %2180 = vmatprep.mubr.bf16.mxu0 %v943
        %2181 = vmatmul.mubr.bf16.gmra.mxu0 %v879
        %v2182 = vpop.f32.mrf.mxu0
        %v2183 = vadd.f32 %v2022, %v2182
        %v2184 = vpop.f32.mrf.mxu0
        %v2185 = vpop.f32.mrf.mxu0
        %v2186 = vadd.f32 %v2025, %v2185
        %v2187 = vpop.f32.mrf.mxu0
        %2188 = vmatprep.mubr.bf16.mxu0 %v944
        %2189 = vmatmul.mubr.bf16.gmra.mxu0 %v880
        %v2190 = vpop.f32.mrf.mxu0
        %v2191 = vadd.f32 %v2030, %v2190
        %v2192 = vpop.f32.mrf.mxu0
        %v2193 = vpop.f32.mrf.mxu0
        %v2194 = vadd.f32 %v2033, %v2193
        %v2195 = vpop.f32.mrf.mxu0
        %2196 = vmatprep.mubr.bf16.mxu0 %v945
        %2197 = vmatmul.mubr.bf16.gmra.mxu0 %v881
        %v2198 = vpop.f32.mrf.mxu0
        %v2199 = vadd.f32 %v2038, %v2198
        %v2200 = vpop.f32.mrf.mxu0
        %v2201 = vpop.f32.mrf.mxu0
        %v2202 = vadd.f32 %v2041, %v2201
        %v2203 = vpop.f32.mrf.mxu0
        %2204 = vmatprep.mubr.bf16.mxu0 %v946
        %2205 = vmatmul.mubr.bf16.gmra.mxu0 %v882
        %v2206 = vpop.f32.mrf.mxu0
        %v2207 = vadd.f32 %v2046, %v2206
        %v2208 = vpop.f32.mrf.mxu0
        %v2209 = vpop.f32.mrf.mxu0
        %v2210 = vadd.f32 %v2049, %v2209
        %v2211 = vpop.f32.mrf.mxu0
        %2212 = vmatprep.mubr.bf16.mxu0 %v947
        %2213 = vmatmul.mubr.bf16.gmra.mxu0 %v883
        %v2214 = vpop.f32.mrf.mxu0
        %v2215 = vadd.f32 %v2054, %v2214
        %v2216 = vpop.f32.mrf.mxu0
        %v2217 = vpop.f32.mrf.mxu0
        %v2218 = vadd.f32 %v2057, %v2217
        %v2219 = vpop.f32.mrf.mxu0
        %2220 = vmatprep.mubr.bf16.mxu0 %v948
        %2221 = vmatmul.mubr.bf16.gmra.mxu0 %v884
        %v2222 = vpop.f32.mrf.mxu0
        %v2223 = vadd.f32 %v2062, %v2222
        %v2224 = vpop.f32.mrf.mxu0
        %v2225 = vpop.f32.mrf.mxu0
        %v2226 = vadd.f32 %v2065, %v2225
        %v2227 = vpop.f32.mrf.mxu0
        %2228 = vmatprep.mubr.bf16.mxu0 %v949
        %2229 = vmatmul.mubr.bf16.gmra.mxu0 %v885
        %v2230 = vpop.f32.mrf.mxu0
        %v2231 = vadd.f32 %v2070, %v2230
        %v2232 = vpop.f32.mrf.mxu0
        %v2233 = vpop.f32.mrf.mxu0
        %v2234 = vadd.f32 %v2073, %v2233
        %v2235 = vpop.f32.mrf.mxu0
        %2236 = vmatprep.mubr.bf16.mxu0 %v950
        %2237 = vmatmul.mubr.bf16.gmra.mxu0 %v886
        %v2238 = vpop.f32.mrf.mxu0
        %v2239 = vadd.f32 %v2078, %v2238
        %v2240 = vpop.f32.mrf.mxu0
        %v2241 = vpop.f32.mrf.mxu0
        %v2242 = vadd.f32 %v2081, %v2241
        %v2243 = vpop.f32.mrf.mxu0
        %2244 = vmatprep.mubr.bf16.mxu0 %v951
        %2245 = vmatmul.mubr.bf16.gmra.mxu0 %v887
        %v2246 = vpop.f32.mrf.mxu0
        %v2247 = vadd.f32 %v2086, %v2246
        %v2248 = vpop.f32.mrf.mxu0
        %v2249 = vpop.f32.mrf.mxu0
        %v2250 = vadd.f32 %v2089, %v2249
        %v2251 = vpop.f32.mrf.mxu0
        %2252 = vmatprep.mubr.bf16.mxu0 %v952
        %2253 = vmatmul.mubr.bf16.gmra.mxu0 %v888
        %v2254 = vpop.f32.mrf.mxu0
        %v2255 = vadd.f32 %v2094, %v2254
        %v2256 = vpop.f32.mrf.mxu0
        %v2257 = vpop.f32.mrf.mxu0
        %v2258 = vadd.f32 %v2097, %v2257
        %v2259 = vpop.f32.mrf.mxu0
        %2260 = vmatprep.mubr.bf16.mxu0 %v953
        %2261 = vmatmul.mubr.bf16.gmra.mxu0 %v889
        %v2262 = vpop.f32.mrf.mxu0
        %v2263 = vadd.f32 %v2102, %v2262
        %v2264 = vpop.f32.mrf.mxu0
        %v2265 = vpop.f32.mrf.mxu0
        %v2266 = vadd.f32 %v2105, %v2265
        %v2267 = vpop.f32.mrf.mxu0
        %2268 = vmatprep.mubr.bf16.mxu0 %v1040
        %2269 = vmatmul.mubr.bf16.gmra.mxu0 %v1036
        %v2270 = vpop.f32.mrf.mxu0
        %v2271 = vadd.f32 %v2110, %v2270
        %v2272 = vpop.f32.mrf.mxu0
        %v2273 = vpop.f32.mrf.mxu0
        %v2274 = vadd.f32 %v2113, %v2273
        %v2275 = vpop.f32.mrf.mxu0
        %2276 = vmatprep.mubr.bf16.mxu0 %v1052
        %2277 = vmatmul.mubr.bf16.gmra.mxu0 %v1048
        %v2278 = vpop.f32.mrf.mxu0
        %v2279 = vadd.f32 %v2118, %v2278
        %v2280 = vpop.f32.mrf.mxu0
        %v2281 = vpop.f32.mrf.mxu0
        %v2282 = vadd.f32 %v2121, %v2281
        %v2283 = vpop.f32.mrf.mxu0
        %2284 = vdwg.mxu0
        %2285 = vmatprep.subr.bf16.mxu0 0
        %2286 = vmatpush1.bf16.msra.mxu0 %v1568
        %2287 = vmatprep.subr.bf16.mxu0 0
        %2288 = vmatpush1.bf16.msra.mxu0 %v1567
        %2289 = vmatprep.subr.bf16.mxu0 0
        %2290 = vmatpush1.bf16.msra.mxu0 %v1566
        %2291 = vmatprep.subr.bf16.mxu0 0
        %2292 = vmatpush1.bf16.msra.mxu0 %v1565
        %2293 = vmatprep.subr.bf16.mxu0 0
        %2294 = vmatpush1.bf16.msra.mxu0 %v1564
        %2295 = vmatprep.subr.bf16.mxu0 0
        %2296 = vmatpush1.bf16.msra.mxu0 %v1563
        %2297 = vmatprep.subr.bf16.mxu0 0
        %2298 = vmatpush1.bf16.msra.mxu0 %v1562
        %2299 = vmatprep.subr.bf16.mxu0 0
        %2300 = vmatpush1.bf16.msra.mxu0 %v1561
        %2301 = vmatprep.subr.bf16.mxu0 0
        %2302 = vmatpush2.bf16.msra.mxu0 0
        %2303 = vmatprep.subr.bf16.mxu0 0
        %2304 = vmatpush2.bf16.msra.mxu0 0
        %2305 = vmatprep.subr.bf16.mxu0 0
        %2306 = vmatpush2.bf16.msra.mxu0 0
        %2307 = vmatprep.subr.bf16.mxu0 0
        %2308 = vmatpush2.bf16.msra.mxu0 0
        %2309 = vmatprep.subr.bf16.mxu0 0
        %2310 = vmatpush2.bf16.msra.mxu0 0
        %2311 = vmatprep.subr.bf16.mxu0 0
        %2312 = vmatpush2.bf16.msra.mxu0 0
        %2313 = vmatprep.subr.bf16.mxu0 0
        %2314 = vmatpush2.bf16.msra.mxu0 0
        %2315 = vmatprep.subr.bf16.mxu0 0
        %2316 = vmatpush2.bf16.msra.mxu0 0
        %2317 = vmatprep.mubr.bf16.mxu0 0
        %2318 = vmatmul.mubr.bf16.gmra.mxu0 %v1004
        %v2319 = vpop.f32.mrf.mxu0
        %v2320 = vadd.f32 %v2159, %v2319
        %v2321 = vpop.f32.mrf.mxu0
        %v2322 = vpop.f32.mrf.mxu0
        %v2323 = vadd.f32 %v2162, %v2322
        %v2324 = vpop.f32.mrf.mxu0
        %2325 = vmatprep.mubr.bf16.mxu0 0
        %2326 = vmatmul.mubr.bf16.gmra.mxu0 %v1005
        %v2327 = vpop.f32.mrf.mxu0
        %v2328 = vadd.f32 %v2167, %v2327
        %v2329 = vpop.f32.mrf.mxu0
        %v2330 = vpop.f32.mrf.mxu0
        %v2331 = vadd.f32 %v2170, %v2330
        %v2332 = vpop.f32.mrf.mxu0
        %2333 = vmatprep.mubr.bf16.mxu0 0
        %2334 = vmatmul.mubr.bf16.gmra.mxu0 %v1006
        %v2335 = vpop.f32.mrf.mxu0
        %v2336 = vadd.f32 %v2175, %v2335
        %v2337 = vpop.f32.mrf.mxu0
        %v2338 = vpop.f32.mrf.mxu0
        %v2339 = vadd.f32 %v2178, %v2338
        %v2340 = vpop.f32.mrf.mxu0
        %2341 = vmatprep.mubr.bf16.mxu0 0
        %2342 = vmatmul.mubr.bf16.gmra.mxu0 %v1007
        %v2343 = vpop.f32.mrf.mxu0
        %v2344 = vadd.f32 %v2183, %v2343
        %v2345 = vpop.f32.mrf.mxu0
        %v2346 = vpop.f32.mrf.mxu0
        %v2347 = vadd.f32 %v2186, %v2346
        %v2348 = vpop.f32.mrf.mxu0
        %2349 = vmatprep.mubr.bf16.mxu0 0
        %2350 = vmatmul.mubr.bf16.gmra.mxu0 %v1008
        %v2351 = vpop.f32.mrf.mxu0
        %v2352 = vadd.f32 %v2191, %v2351
        %v2353 = vpop.f32.mrf.mxu0
        %v2354 = vpop.f32.mrf.mxu0
        %v2355 = vadd.f32 %v2194, %v2354
        %v2356 = vpop.f32.mrf.mxu0
        %2357 = vmatprep.mubr.bf16.mxu0 0
        %2358 = vmatmul.mubr.bf16.gmra.mxu0 %v1009
        %v2359 = vpop.f32.mrf.mxu0
        %v2360 = vadd.f32 %v2199, %v2359
        %v2361 = vpop.f32.mrf.mxu0
        %v2362 = vpop.f32.mrf.mxu0
        %v2363 = vadd.f32 %v2202, %v2362
        %v2364 = vpop.f32.mrf.mxu0
        %2365 = vmatprep.mubr.bf16.mxu0 0
        %2366 = vmatmul.mubr.bf16.gmra.mxu0 %v1010
        %v2367 = vpop.f32.mrf.mxu0
        %v2368 = vadd.f32 %v2207, %v2367
        %v2369 = vpop.f32.mrf.mxu0
        %v2370 = vpop.f32.mrf.mxu0
        %v2371 = vadd.f32 %v2210, %v2370
        %v2372 = vpop.f32.mrf.mxu0
        %2373 = vmatprep.mubr.bf16.mxu0 0
        %2374 = vmatmul.mubr.bf16.gmra.mxu0 %v1011
        %v2375 = vpop.f32.mrf.mxu0
        %v2376 = vadd.f32 %v2215, %v2375
        %v2377 = vpop.f32.mrf.mxu0
        %v2378 = vpop.f32.mrf.mxu0
        %v2379 = vadd.f32 %v2218, %v2378
        %v2380 = vpop.f32.mrf.mxu0
        %2381 = vmatprep.mubr.bf16.mxu0 0
        %2382 = vmatmul.mubr.bf16.gmra.mxu0 %v1012
        %v2383 = vpop.f32.mrf.mxu0
        %v2384 = vadd.f32 %v2223, %v2383
        %v2385 = vpop.f32.mrf.mxu0
        %v2386 = vpop.f32.mrf.mxu0
        %v2387 = vadd.f32 %v2226, %v2386
        %v2388 = vpop.f32.mrf.mxu0
        %2389 = vmatprep.mubr.bf16.mxu0 0
        %2390 = vmatmul.mubr.bf16.gmra.mxu0 %v1013
        %v2391 = vpop.f32.mrf.mxu0
        %v2392 = vadd.f32 %v2231, %v2391
        %v2393 = vpop.f32.mrf.mxu0
        %v2394 = vpop.f32.mrf.mxu0
        %v2395 = vadd.f32 %v2234, %v2394
        %v2396 = vpop.f32.mrf.mxu0
        %2397 = vmatprep.mubr.bf16.mxu0 0
        %2398 = vmatmul.mubr.bf16.gmra.mxu0 %v1014
        %v2399 = vpop.f32.mrf.mxu0
        %v2400 = vadd.f32 %v2239, %v2399
        %v2401 = vpop.f32.mrf.mxu0
        %v2402 = vpop.f32.mrf.mxu0
        %v2403 = vadd.f32 %v2242, %v2402
        %v2404 = vpop.f32.mrf.mxu0
        %2405 = vmatprep.mubr.bf16.mxu0 0
        %2406 = vmatmul.mubr.bf16.gmra.mxu0 %v1015
        %v2407 = vpop.f32.mrf.mxu0
        %v2408 = vadd.f32 %v2247, %v2407
        %v2409 = vpop.f32.mrf.mxu0
        %v2410 = vpop.f32.mrf.mxu0
        %v2411 = vadd.f32 %v2250, %v2410
        %v2412 = vpop.f32.mrf.mxu0
        %2413 = vmatprep.mubr.bf16.mxu0 0
        %2414 = vmatmul.mubr.bf16.gmra.mxu0 %v1016
        %v2415 = vpop.f32.mrf.mxu0
        %v2416 = vadd.f32 %v2255, %v2415
        %v2417 = vpop.f32.mrf.mxu0
        %v2418 = vpop.f32.mrf.mxu0
        %v2419 = vadd.f32 %v2258, %v2418
        %v2420 = vpop.f32.mrf.mxu0
        %2421 = vmatprep.mubr.bf16.mxu0 0
        %2422 = vmatmul.mubr.bf16.gmra.mxu0 %v1017
        %v2423 = vpop.f32.mrf.mxu0
        %v2424 = vadd.f32 %v2263, %v2423
        %v2425 = vpop.f32.mrf.mxu0
        %v2426 = vpop.f32.mrf.mxu0
        %v2427 = vadd.f32 %v2266, %v2426
        %v2428 = vpop.f32.mrf.mxu0
        %2429 = vmatprep.mubr.bf16.mxu0 0
        %2430 = vmatmul.mubr.bf16.gmra.mxu0 %v1044
        %v2431 = vpop.f32.mrf.mxu0
        %v2432 = vadd.f32 %v2271, %v2431
        %v2433 = vpop.f32.mrf.mxu0
        %v2434 = vpop.f32.mrf.mxu0
        %v2435 = vadd.f32 %v2274, %v2434
        %v2436 = vpop.f32.mrf.mxu0
        %2437 = vmatprep.mubr.bf16.mxu0 0
        %2438 = vmatmul.mubr.bf16.gmra.mxu0 %v1056
        %v2439 = vpop.f32.mrf.mxu0
        %v2440 = vadd.f32 %v2279, %v2439
        %v2441 = vpop.f32.mrf.mxu0
        %v2442 = vpop.f32.mrf.mxu0
        %v2443 = vadd.f32 %v2282, %v2442
        %v2444 = vpop.f32.mrf.mxu0
        %2445 = vdwg.mxu0
        %v2446 = vmax.f32 %v2320, 0.0
        %v2447 = vmax.f32 %v2323, 0.0
        %v2448 = vmax.f32 %v2328, 0.0
        %v2449 = vmax.f32 %v2331, 0.0
        %v2450 = vmax.f32 %v2336, 0.0
        %v2451 = vmax.f32 %v2339, 0.0
        %v2452 = vmax.f32 %v2344, 0.0
        %v2453 = vmax.f32 %v2347, 0.0
        %v2454 = vmax.f32 %v2352, 0.0
        %v2455 = vmax.f32 %v2355, 0.0
        %v2456 = vmax.f32 %v2360, 0.0
        %v2457 = vmax.f32 %v2363, 0.0
        %v2458 = vmax.f32 %v2368, 0.0
        %v2459 = vmax.f32 %v2371, 0.0
        %v2460 = vmax.f32 %v2376, 0.0
        %v2461 = vmax.f32 %v2379, 0.0
        %v2462 = vmax.f32 %v2384, 0.0
        %v2463 = vmax.f32 %v2387, 0.0
        %v2464 = vmax.f32 %v2392, 0.0
        %v2465 = vmax.f32 %v2395, 0.0
        %v2466 = vmax.f32 %v2400, 0.0
        %v2467 = vmax.f32 %v2403, 0.0
        %v2468 = vmax.f32 %v2408, 0.0
        %v2469 = vmax.f32 %v2411, 0.0
        %v2470 = vmax.f32 %v2416, 0.0
        %v2471 = vmax.f32 %v2419, 0.0
        %v2472 = vmax.f32 %v2424, 0.0
        %v2473 = vmax.f32 %v2427, 0.0
        %v2474 = vmax.f32 %v2432, 0.0
        %v2475 = vmax.f32 %v2435, 0.0
        %v2476 = vmax.f32 %v2440, 0.0
        %v2477 = vmax.f32 %v2443, 0.0
        %v2478 = vpack.c.bf16 %v2447, %v2446
        %v2479 = vpack.c.bf16 %v2449, %v2448
        %v2480 = vpack.c.bf16 %v2451, %v2450
        %v2481 = vpack.c.bf16 %v2453, %v2452
        %v2482 = vpack.c.bf16 %v2455, %v2454
        %v2483 = vpack.c.bf16 %v2457, %v2456
        %v2484 = vpack.c.bf16 %v2459, %v2458
        %v2485 = vpack.c.bf16 %v2461, %v2460
        %v2486 = vpack.c.bf16 %v2463, %v2462
        %v2487 = vpack.c.bf16 %v2465, %v2464
        %v2488 = vpack.c.bf16 %v2467, %v2466
        %v2489 = vpack.c.bf16 %v2469, %v2468
        %v2490 = vpack.c.bf16 %v2471, %v2470
        %v2491 = vpack.c.bf16 %v2473, %v2472
        %v2492 = vpack.c.bf16 %v2475, %v2474
        %v2493 = vpack.c.bf16 %v2477, %v2476
        %v2510 = vunpack.c.l.b16 %v2478
        %v2511 = vunpack.c.h.b16 %v2478
        %v2512 = vunpack.c.l.b16 %v2479
        %v2513 = vunpack.c.h.b16 %v2479
        %v2514 = vunpack.c.l.b16 %v2480
        %v2515 = vunpack.c.h.b16 %v2480
        %v2516 = vunpack.c.l.b16 %v2481
        %v2517 = vunpack.c.h.b16 %v2481
        %v2518 = vunpack.c.l.b16 %v2482
        %v2519 = vunpack.c.h.b16 %v2482
        %v2520 = vunpack.c.l.b16 %v2483
        %v2521 = vunpack.c.h.b16 %v2483
        %v2522 = vunpack.c.l.b16 %v2484
        %v2523 = vunpack.c.h.b16 %v2484
        %v2524 = vunpack.c.l.b16 %v2485
        %v2525 = vunpack.c.h.b16 %v2485
        %v2526 = vunpack.c.l.b16 %v2486
        %v2527 = vunpack.c.h.b16 %v2486
        %v2528 = vunpack.c.l.b16 %v2487
        %v2529 = vunpack.c.h.b16 %v2487
        %v2530 = vunpack.c.l.b16 %v2488
        %v2531 = vunpack.c.h.b16 %v2488
        %v2532 = vunpack.c.l.b16 %v2489
        %v2533 = vunpack.c.h.b16 %v2489
        %v2534 = vunpack.c.l.b16 %v2490
        %v2535 = vunpack.c.h.b16 %v2490
        %v2536 = vunpack.c.l.b16 %v2491
        %v2537 = vunpack.c.h.b16 %v2491
        %v2538 = vunpack.c.l.b16 %v2492
        %v2539 = vunpack.c.h.b16 %v2492
        %v2540 = vunpack.c.l.b16 %v2493
        %v2541 = vunpack.c.h.b16 %v2493
        %v2542 = vpack.c.b16 %v2510, %v2510
        %v2543 = vpack.c.b16 %v2511, %v2511
        %v2544 = vpack.c.b16 %v2512, %v2512
        %v2545 = vpack.c.b16 %v2513, %v2513
        %v2546 = vpack.c.b16 %v2514, %v2514
        %v2547 = vpack.c.b16 %v2515, %v2515
        %v2548 = vpack.c.b16 %v2516, %v2516
        %v2549 = vpack.c.b16 %v2517, %v2517
        %v2550 = vpack.c.b16 %v2518, %v2518
        %v2551 = vpack.c.b16 %v2519, %v2519
        %v2552 = vpack.c.b16 %v2520, %v2520
        %v2553 = vpack.c.b16 %v2521, %v2521
        %v2554 = vpack.c.b16 %v2522, %v2522
        %v2555 = vpack.c.b16 %v2523, %v2523
        %v2556 = vpack.c.b16 %v2524, %v2524
        %v2557 = vpack.c.b16 %v2525, %v2525
        %v2558 = vpack.c.b16 %v2526, %v2526
        %v2559 = vpack.c.b16 %v2527, %v2527
        %v2560 = vpack.c.b16 %v2528, %v2528
        %v2561 = vpack.c.b16 %v2529, %v2529
        %v2562 = vpack.c.b16 %v2530, %v2530
        %v2563 = vpack.c.b16 %v2531, %v2531
        %v2564 = vpack.c.b16 %v2532, %v2532
        %v2565 = vpack.c.b16 %v2533, %v2533
        %v2566 = vpack.c.b16 %v2534, %v2534
        %v2567 = vpack.c.b16 %v2535, %v2535
        %v2568 = vpack.c.b16 %v2536, %v2536
        %v2569 = vpack.c.b16 %v2537, %v2537
        %v2570 = vpack.c.b16 %v2538, %v2538
        %v2571 = vpack.c.b16 %v2539, %v2539
        %v2572 = vpack.c.b16 %v2540, %v2540
        %v2573 = vpack.c.b16 %v2541, %v2541
        %2606 = vst [vmem:[%s163] sm:$0xf] %v2542
        %2607 = vst [vmem:[%s163 + $0x4] sm:$0xf] %v2543
        %2608 = vst [vmem:[%s163 + $0x8] sm:$0xf] %v2544
        %2609 = vst [vmem:[%s163 + $0xc] sm:$0xf] %v2545
        %2610 = vst [vmem:[%s163 + $0x10] sm:$0xf] %v2546
        %2611 = vst [vmem:[%s163 + $0x14] sm:$0xf] %v2547
        %2612 = vst [vmem:[%s163 + $0x18] sm:$0xf] %v2548
        %2613 = vst [vmem:[%s163 + $0x1c] sm:$0xf] %v2549
        %2614 = vst [vmem:[%s163 + $0x20] sm:$0xf] %v2550
        %2615 = vst [vmem:[%s163 + $0x24] sm:$0xf] %v2551
        %2616 = vst [vmem:[%s163 + $0x28] sm:$0xf] %v2552
        %2617 = vst [vmem:[%s163 + $0x2c] sm:$0xf] %v2553
        %2618 = vst [vmem:[%s163 + $0x30] sm:$0xf] %v2554
        %2619 = vst [vmem:[%s163 + $0x34] sm:$0xf] %v2555
        %2620 = vst [vmem:[%s163 + $0x38] sm:$0xf] %v2556
        %2621 = vst [vmem:[%s163 + $0x3c] sm:$0xf] %v2557
        %2622 = vst [vmem:[%s163 + $0x40] sm:$0xf] %v2558
        %2623 = vst [vmem:[%s163 + $0x44] sm:$0xf] %v2559
        %2624 = vst [vmem:[%s163 + $0x48] sm:$0xf] %v2560
        %2625 = vst [vmem:[%s163 + $0x4c] sm:$0xf] %v2561
        %2626 = vst [vmem:[%s163 + $0x50] sm:$0xf] %v2562
        %2627 = vst [vmem:[%s163 + $0x54] sm:$0xf] %v2563
        %2628 = vst [vmem:[%s163 + $0x58] sm:$0xf] %v2564
        %2629 = vst [vmem:[%s163 + $0x5c] sm:$0xf] %v2565
        %2630 = vst [vmem:[%s163 + $0x60] sm:$0xf] %v2566
        %2631 = vst [vmem:[%s163 + $0x64] sm:$0xf] %v2567
        %2632 = vst [vmem:[%s163 + $0x68] sm:$0xf] %v2568
        %2633 = vst [vmem:[%s163 + $0x6c] sm:$0xf] %v2569
        %2634 = vst [vmem:[%s163 + $0x70] sm:$0xf] %v2570
        %2635 = vst [vmem:[%s163 + $0x74] sm:$0xf] %v2571
        %2636 = vst [vmem:[%s163 + $0x78] sm:$0xf] %v2572
        %2637 = vst [vmem:[%s163 + $0x7c] sm:$0xf] %v2573
        %s2638 = sand.u32 %s93, 1
        %s2639 = scalar_lea.sflag [#allocation3], %s2638
        %s2640 = sand.u32 %s93, 1
        %s2641 = smul.addr %s2640, 128
        %s2642 = scalar_lea.vmem [#allocation2], %s2641
        // Predicated region
        $region33: #{tpu_custom_call.1} parent=31 // pred_check
          %p2643 = pneg %p103
        $region34: #{tpu_custom_call.1} parent=31 // pred_check_branch
          %2645 = sbr.rel (%p2643) target = $region36
        $region35: #{tpu_custom_call.1} parent=31 // pred_region
          %s2647 = ssub.s32 2048, 2048
          %2648 = vsyncadd %s2639, %s2647
          %s2649 = smul.addr %s17, 32
          %s2650 = smul.addr %s2649, 64
          %s2651 = scalar_lea.hbm %s3, %s2650
          %s2652 = sshll.u32 %s2642, 4
          %s2653 = int_to_ptr.vmem [resolvable:$true] %s2652
          %2658 = dma.vmem_to_hbm [thread:$0]  %s2653, 2048, %s2651, %s2639, 64, 64, 4
        $region36: #{tpu_custom_call.1} parent=31 // pred_fallthru
          _
      $region32: #{tpu_custom_call.1} parent=5 // pred_fallthru
        _
      %p2659 = scmp.le.s32.totalorder 2, %s12
      // Predicated region
      $region37: #{tpu_custom_call.1} parent=5 // pred_check
        %p2660 = pneg %p2659
      $region38: #{tpu_custom_call.1} parent=5 // pred_check_branch
        %2662 = sbr.rel (%p2660) target = $region40
      $region39: #{tpu_custom_call.1} parent=5 // pred_region
        %s2663 = ssub.s32 %s12, 2
        // Predicated region
        $region41: #{tpu_custom_call.1} parent=39 // pred_check
          %p2664 = pneg %p109
        $region42: #{tpu_custom_call.1} parent=39 // pred_check_branch
          %2666 = sbr.rel (%p2664) target = $region44
        $region43: #{tpu_custom_call.1} parent=39 // pred_region
          %s2667 = sand.u32 %s94, 1
          %s2668 = scalar_lea.sflag [#allocation3], %s2667
          %s2669 = sand.u32 %s94, 1
          %s2670 = smul.addr %s2669, 128
          %s2671 = scalar_lea.vmem [#allocation2], %s2670
          %2672 = dma.done %s2668, 2048
        $region44: #{tpu_custom_call.1} parent=39 // pred_fallthru
          _
      $region40: #{tpu_custom_call.1} parent=5 // pred_fallthru
        _
    $region6: #{tpu_custom_call.1} parent=1 // loop_footer
      %s16 = sadd.s32 1, %s12
    $region7: #{tpu_custom_call.1} parent=1 // loop_footer_branch
      %11 = sbr.rel target = $region3
    $region8: #{tpu_custom_call.1} parent=1 // loop_exit
      _
    %2673 = vsyncpa [#allocation3], 1
    %s2674 = scalar_lea.sflag [#allocation3], 1
    %2675 = vsyncpa %s2674, 1

</llo_original>
